<compile_context>
chip_gen: v7x
topology: tpu7x:2x2x1
jax: 0.10.0
libtpu: 0.0.40
codegen_flags: <defaults>
</compile_context>

<pallas_src>
import math

import numpy as np
import jax
import jax.numpy as jnp
from jax.experimental import pallas as pl
from jax.experimental.pallas import tpu as pltpu


def _round_up(x, m):
    return (x + m - 1) // m * m


# --------------------------- parameter building ---------------------------- #
def init_conv_params(key, cout, cin, k=3):
    """Mirror PyTorch Conv2d default init: U(+-1/sqrt(fan_in)). Returns OIHW."""
    fan_in = cin * k * k
    bound = 1.0 / math.sqrt(fan_in)
    kw_key, kb_key = jax.random.split(key)
    w = jax.random.uniform(kw_key, (cout, cin, k, k), jnp.float32, -bound, bound)
    b = jax.random.uniform(kb_key, (cout,), jnp.float32, -bound, bound)
    return w, b


def pack_conv_params(w_oihw, bias, w_in, ow, lanes_in):
    """Fold im2col + W-axis stride-2 selection + 1-px W padding into weights.

    The layer input is stored UNPADDED in W: lane = j*cin + ci for stored
    column j in [0, w_in), zero-extended to `lanes_in` lanes.  Conceptual
    padded column wpad = j + 1, so tap kw of output column o reads stored
    column j = 2*o + kw - 1 (dropped when out of range — that's exactly the
    zero W padding).  The three kh taps are stacked along K so one matmul
    covers the whole 3x3 receptive field.

    Returns:
      w_stacked (3*lanes_in, ow*cout) bf16
      bias_row  (1, ow*cout) f32, bias tiled across output columns (ow-major).
    """
    w_np = np.asarray(w_oihw, dtype=np.float32)
    cout, cin, _, _ = w_np.shape
    big = np.zeros((3, lanes_in, ow * cout), np.float32)
    for kh in range(3):
        for kw in range(3):
            wt = w_np[:, :, kh, kw].T                        # (cin, cout)
            for o in range(ow):
                j = 2 * o + kw - 1                           # stored input column
                if 0 <= j < w_in:
                    big[kh, j * cin:(j + 1) * cin, o * cout:(o + 1) * cout] = wt
    w_stacked = big.reshape(3 * lanes_in, ow * cout)
    bias_row = np.tile(np.asarray(bias, np.float32), ow).reshape(1, ow * cout)
    return jnp.asarray(w_stacked, jnp.bfloat16), jnp.asarray(bias_row, jnp.float32)


def pack_params(raw_params, w):
    (w1, b1), (w2, b2), (w3, b3) = raw_params
    c_in, c1, c2 = w1.shape[1], w1.shape[0], w2.shape[0]
    ow1, ow2, ow3 = w // 2, w // 4, w // 8
    l1 = _round_up(w * c_in, 128)           # layer-1 input lanes (zero padded)
    l2, l3 = ow1 * c1, ow2 * c2             # layer-2/3 input lanes (exact)
    return (pack_conv_params(w1, b1, w, ow1, l1),
            pack_conv_params(w2, b2, ow1, ow2, l2),
            pack_conv_params(w3, b3, ow2, ow3, l3))


# ------------------------------ fused kernel ------------------------------- #
def make_fused_forward(n, c_in, h, w, channels):
    """Build the single-pallas_call SimpleCNN forward for static shapes."""
    assert h % 8 == 0 and w % 8 == 0, "three stride-2 layers need H, W % 8 == 0"
    c1, c2, c3 = channels
    oh1, ow1 = h // 2, w // 2
    oh2, ow2 = oh1 // 2, ow1 // 2
    oh3, ow3 = oh2 // 2, ow2 // 2

    l1 = _round_up(w * c_in, 128)           # layer-1 input lanes (zero padded)
    l2, l3 = ow1 * c1, ow2 * c2             # layer-2/3 input lane widths
    nl3 = ow3 * c3                          # final matmul output lane width
    assert l2 % 128 == 0 and l3 % 128 == 0 and nl3 % 128 == 0, \
        "lane widths must be multiples of 128 for lane-aligned stores / concat"

    r1 = (h + 2) // 2                       # rows per parity plane, layer-1 input
    r2 = oh1 // 2 + 1                       # layer-2 input plane rows (pad + interior)
    r3 = oh2 // 2 + 1                       # layer-3 input plane rows

    def conv_layer(in_ref, w_ref, b_ref, oh):
        """One conv+ReLU: a single fused-tap MXU matmul over (oh*n, 3*lanes)."""
        m = oh * n
        # Output row i needs padded input rows 2i, 2i+1, 2i+2 (batch in rows):
        #   plane 0 row i, plane 1 row i, plane 0 row i+1.
        lhs = jnp.concatenate(
            [in_ref[0, 0:m, :], in_ref[1, 0:m, :], in_ref[0, n:m + n, :]],
            axis=-1)                                         # (oh*n, 3*lanes) bf16
        acc = jnp.dot(lhs, w_ref[...], preferred_element_type=jnp.float32)
        return jnp.maximum(acc + b_ref[...], 0.0)            # bias + ReLU in f32

    def scatter(dst_ref, act_bf16, oh):
        """Output row i -> next layer padded row i+1; one n-sublane store per row."""
        for i in range(oh):
            p, rr = (i + 1) % 2, (i + 1) // 2
            dst_ref[p, rr * n:(rr + 1) * n, :] = act_bf16[i * n:(i + 1) * n, :]

    def kernel(xp_ref, w1_ref, b1_ref, w2_ref, b2_ref, w3_ref, b3_ref,
               out_ref, act2_ref, act3_ref):
        # Zero only the top-pad row (plane 0, plane-row 0, all batches); every
        # other read region is fully overwritten by the scatter stores below.
        act2_ref[0, 0:n, :] = jnp.zeros((n, l2), jnp.bfloat16)
        act3_ref[0, 0:n, :] = jnp.zeros((n, l3), jnp.bfloat16)

        a1 = conv_layer(xp_ref, w1_ref, b1_ref, oh1)         # (oh1*n, ow1*c1) f32
        scatter(act2_ref, a1.astype(jnp.bfloat16), oh1)
        a2 = conv_layer(act2_ref, w2_ref, b2_ref, oh2)       # (oh2*n, ow2*c2) f32
        scatter(act3_ref, a2.astype(jnp.bfloat16), oh2)
        a3 = conv_layer(act3_ref, w3_ref, b3_ref, oh3)       # (oh3*n, ow3*c3) f32
        out_ref[...] = a3

    vmem = pltpu.MemorySpace.VMEM
    fused = pl.pallas_call(
        kernel,
        out_shape=jax.ShapeDtypeStruct((oh3 * n, nl3), jnp.float32),
        in_specs=[pl.BlockSpec(memory_space=vmem)] * 7,
        out_specs=pl.BlockSpec(memory_space=vmem),
        scratch_shapes=[
            pltpu.VMEM((2, r2 * n, l2), jnp.bfloat16),   # layer-2 input (parity planes)
            pltpu.VMEM((2, r3 * n, l3), jnp.bfloat16),   # layer-3 input (parity planes)
        ],
    )

    def pack_input(x_nchw):
        # NCHW -> H-padded, row-parity-split, batch-in-rows, lane-padded bf16:
        #   xp[p, rr*n + nb, j*c_in + ci] = x_padded[nb, 2*rr + p, j, ci]
        x_nhwc = jnp.transpose(x_nchw, (0, 2, 3, 1))
        x_pad = jnp.pad(x_nhwc, ((0, 0), (1, 1), (0, 0), (0, 0)))     # H pad only
        rows = x_pad.reshape(n, h + 2, w * c_in)
        rows = jnp.pad(rows, ((0, 0), (0, 0), (0, l1 - w * c_in)))    # lane pad -> 128
        rows = rows.reshape(n, r1, 2, l1)                             # row = 2*rr + p
        xp = jnp.transpose(rows, (2, 1, 0, 3)).reshape(2, r1 * n, l1)
        return xp.astype(jnp.bfloat16)

    def forward(x_nchw, packed):
        (w1, b1), (w2, b2), (w3, b3) = packed
        xp = pack_input(x_nchw)
        out = fused(xp, w1, b1, w2, b2, w3, b3)               # (oh3*n, ow3*c3)
        out = out.reshape(oh3, n, ow3, c3)                    # rows = (oh, batch)
        return jnp.transpose(out, (1, 3, 0, 2))               # -> NCHW

    return forward


# ------------------------------- reference --------------------------------- #
def reference_forward(x_nchw, raw_params):
    out = x_nchw
    for wgt, b in raw_params:
        out = jax.lax.conv_general_dilated(
            out, wgt, window_strides=(2, 2), padding=((1, 1), (1, 1)),
            dimension_numbers=("NCHW", "OIHW", "NCHW"))
        out = jnp.maximum(out + b.reshape(1, -1, 1, 1), 0.0)
    return out


# ---------------------------------- main ------------------------------------ #
if __name__ == "__main__":
    input_channels = 4
    num_features = 64
    batch, spatial = 2, 16

    root = jax.random.PRNGKey(0)
    kx, k1, k2, k3 = jax.random.split(root, 4)

    x = jax.random.normal(kx, (batch, input_channels, spatial, spatial), jnp.float32)

    raw_params = (
        init_conv_params(k1, 32, input_channels),
        init_conv_params(k2, 64, 32),
        init_conv_params(k3, num_features, 64),
    )
    packed = pack_params(raw_params, spatial)

    forward = make_fused_forward(batch, input_channels, spatial, spatial,
                                 (32, 64, num_features))
    out = jax.jit(forward)(x, packed)
    out = jax.block_until_ready(out)

    expected_shape = (batch, num_features, spatial // 8, spatial // 8)  # (2, 64, 2, 2)
    assert out.shape == expected_shape, (out.shape, expected_shape)
    assert bool(jnp.all(out >= 0.0)), "ReLU output must be non-negative"
    assert bool(jnp.all(jnp.isfinite(out)))

    # Numerical check vs. XLA conv reference: relative tolerance (bf16 MXU inputs).
    ref = reference_forward(x, raw_params)
    max_err = float(jnp.max(jnp.abs(out - ref)))
    max_ref = float(jnp.max(jnp.abs(ref)))
    assert max_err <= 0.05 * max_ref + 1e-3, (
        f"mismatch vs reference conv: max abs err {max_err}, max |ref| {max_ref}")

    print("KERNEL_OK")
</pallas_src>

<mosaic_0001>
module attributes {stable_mosaic.version = 11 : i64} {
  func.func @kernel(%arg0: memref<2x18x128xbf16, #tpu.memory_space<vmem>>, %arg1: memref<384x256xbf16, #tpu.memory_space<vmem>>, %arg2: memref<1x256xf32, #tpu.memory_space<vmem>>, %arg3: memref<768x256xbf16, #tpu.memory_space<vmem>>, %arg4: memref<1x256xf32, #tpu.memory_space<vmem>>, %arg5: memref<768x128xbf16, #tpu.memory_space<vmem>>, %arg6: memref<1x128xf32, #tpu.memory_space<vmem>>, %arg7: memref<4x128xf32, #tpu.memory_space<vmem>>, %arg8: memref<2x10x256xbf16, #tpu.memory_space<vmem>>, %arg9: memref<2x6x256xbf16, #tpu.memory_space<vmem>>) attributes {dimension_semantics = [], scalar_prefetch = 0 : i64, scratch_operands = 2 : i64, tpu.core_type = #tpu.core_type<tc>} {
    %cst = arith.constant 0.000000e+00 : bf16
    %0 = vector.broadcast %cst : bf16 to vector<2x256xbf16>
    %c0 = arith.constant 0 : index
    %c0_0 = arith.constant 0 : index
    %c0_1 = arith.constant 0 : index
    %1 = vector.load %arg8[%c0, %c0_0, %c0_1] : memref<2x10x256xbf16, #tpu.memory_space<vmem>>, vector<1x2x256xbf16>
    %2 = vector.shape_cast %1 : vector<1x2x256xbf16> to vector<2x256xbf16>
    %3 = vector.shape_cast %0 : vector<2x256xbf16> to vector<1x2x256xbf16>
    tpu.vector_store %arg8[%c0, %c0_0, %c0_1], %3 {strides = array<i32>} : memref<2x10x256xbf16, #tpu.memory_space<vmem>>, vector<1x2x256xbf16>,
    %cst_2 = arith.constant 0.000000e+00 : bf16
    %4 = vector.broadcast %cst_2 : bf16 to vector<2x256xbf16>
    %c0_3 = arith.constant 0 : index
    %c0_4 = arith.constant 0 : index
    %c0_5 = arith.constant 0 : index
    %5 = vector.load %arg9[%c0_3, %c0_4, %c0_5] : memref<2x6x256xbf16, #tpu.memory_space<vmem>>, vector<1x2x256xbf16>
    %6 = vector.shape_cast %5 : vector<1x2x256xbf16> to vector<2x256xbf16>
    %7 = vector.shape_cast %4 : vector<2x256xbf16> to vector<1x2x256xbf16>
    tpu.vector_store %arg9[%c0_3, %c0_4, %c0_5], %7 {strides = array<i32>} : memref<2x6x256xbf16, #tpu.memory_space<vmem>>, vector<1x2x256xbf16>,
    %c0_6 = arith.constant 0 : index
    %c0_7 = arith.constant 0 : index
    %c0_8 = arith.constant 0 : index
    %8 = vector.load %arg0[%c0_6, %c0_7, %c0_8] : memref<2x18x128xbf16, #tpu.memory_space<vmem>>, vector<1x16x128xbf16>
    %9 = vector.shape_cast %8 : vector<1x16x128xbf16> to vector<16x128xbf16>
    %c1 = arith.constant 1 : index
    %c0_9 = arith.constant 0 : index
    %c0_10 = arith.constant 0 : index
    %10 = vector.load %arg0[%c1, %c0_9, %c0_10] : memref<2x18x128xbf16, #tpu.memory_space<vmem>>, vector<1x16x128xbf16>
    %11 = vector.shape_cast %10 : vector<1x16x128xbf16> to vector<16x128xbf16>
    %c0_11 = arith.constant 0 : index
    %c2 = arith.constant 2 : index
    %c0_12 = arith.constant 0 : index
    %12 = vector.load %arg0[%c0_11, %c2, %c0_12] : memref<2x18x128xbf16, #tpu.memory_space<vmem>>, vector<1x16x128xbf16>
    %13 = vector.shape_cast %12 : vector<1x16x128xbf16> to vector<16x128xbf16>
    %14 = tpu.concatenate %9, %11, %13 in 1 : vector<16x128xbf16>, vector<16x128xbf16>, vector<16x128xbf16> -> vector<16x384xbf16>
    %c0_13 = arith.constant 0 : index
    %c0_14 = arith.constant 0 : index
    %15 = vector.load %arg1[%c0_13, %c0_14] : memref<384x256xbf16, #tpu.memory_space<vmem>>, vector<384x256xbf16>
    %cst_15 = arith.constant dense<0.000000e+00> : vector<16x256xf32>
    %16 = tpu.matmul %14, %15, %cst_15 {dimension_numbers = #tpu.dot_dimension_numbers<[1], [0], [0], [1], [0, 0, 1, 1], [], []>} : vector<16x384xbf16>, vector<384x256xbf16>, vector<16x256xf32> -> vector<16x256xf32>
    %c0_16 = arith.constant 0 : index
    %c0_17 = arith.constant 0 : index
    %17 = vector.load %arg2[%c0_16, %c0_17] : memref<1x256xf32, #tpu.memory_space<vmem>>, vector<1x256xf32>
    %18 = vector.broadcast %17 : vector<1x256xf32> to vector<16x256xf32>
    %19 = arith.addf %16, %18 : vector<16x256xf32>
    %cst_18 = arith.constant 0.000000e+00 : f32
    %20 = vector.broadcast %cst_18 : f32 to vector<16x256xf32>
    %21 = arith.maximumf %19, %20 : vector<16x256xf32>
    %22 = arith.truncf %21 : vector<16x256xf32> to vector<16x256xbf16>
    %23 = vector.extract_strided_slice %22 {offsets = [0, 0], sizes = [2, 256], strides = [1, 1]} : vector<16x256xbf16> to vector<2x256xbf16>
    %c1_19 = arith.constant 1 : index
    %c0_20 = arith.constant 0 : index
    %c0_21 = arith.constant 0 : index
    %24 = vector.load %arg8[%c1_19, %c0_20, %c0_21] : memref<2x10x256xbf16, #tpu.memory_space<vmem>>, vector<1x2x256xbf16>
    %25 = vector.shape_cast %24 : vector<1x2x256xbf16> to vector<2x256xbf16>
    %26 = vector.shape_cast %23 : vector<2x256xbf16> to vector<1x2x256xbf16>
    tpu.vector_store %arg8[%c1_19, %c0_20, %c0_21], %26 {strides = array<i32>} : memref<2x10x256xbf16, #tpu.memory_space<vmem>>, vector<1x2x256xbf16>,
    %27 = vector.extract_strided_slice %22 {offsets = [2, 0], sizes = [2, 256], strides = [1, 1]} : vector<16x256xbf16> to vector<2x256xbf16>
    %c0_22 = arith.constant 0 : index
    %c2_23 = arith.constant 2 : index
    %c0_24 = arith.constant 0 : index
    %28 = vector.load %arg8[%c0_22, %c2_23, %c0_24] : memref<2x10x256xbf16, #tpu.memory_space<vmem>>, vector<1x2x256xbf16>
    %29 = vector.shape_cast %28 : vector<1x2x256xbf16> to vector<2x256xbf16>
    %30 = vector.shape_cast %27 : vector<2x256xbf16> to vector<1x2x256xbf16>
    tpu.vector_store %arg8[%c0_22, %c2_23, %c0_24], %30 {strides = array<i32>} : memref<2x10x256xbf16, #tpu.memory_space<vmem>>, vector<1x2x256xbf16>,
    %31 = vector.extract_strided_slice %22 {offsets = [4, 0], sizes = [2, 256], strides = [1, 1]} : vector<16x256xbf16> to vector<2x256xbf16>
    %c1_25 = arith.constant 1 : index
    %c2_26 = arith.constant 2 : index
    %c0_27 = arith.constant 0 : index
    %32 = vector.load %arg8[%c1_25, %c2_26, %c0_27] : memref<2x10x256xbf16, #tpu.memory_space<vmem>>, vector<1x2x256xbf16>
    %33 = vector.shape_cast %32 : vector<1x2x256xbf16> to vector<2x256xbf16>
    %34 = vector.shape_cast %31 : vector<2x256xbf16> to vector<1x2x256xbf16>
    tpu.vector_store %arg8[%c1_25, %c2_26, %c0_27], %34 {strides = array<i32>} : memref<2x10x256xbf16, #tpu.memory_space<vmem>>, vector<1x2x256xbf16>,
    %35 = vector.extract_strided_slice %22 {offsets = [6, 0], sizes = [2, 256], strides = [1, 1]} : vector<16x256xbf16> to vector<2x256xbf16>
    %c0_28 = arith.constant 0 : index
    %c4 = arith.constant 4 : index
    %c0_29 = arith.constant 0 : index
    %36 = vector.load %arg8[%c0_28, %c4, %c0_29] : memref<2x10x256xbf16, #tpu.memory_space<vmem>>, vector<1x2x256xbf16>
    %37 = vector.shape_cast %36 : vector<1x2x256xbf16> to vector<2x256xbf16>
    %38 = vector.shape_cast %35 : vector<2x256xbf16> to vector<1x2x256xbf16>
    tpu.vector_store %arg8[%c0_28, %c4, %c0_29], %38 {strides = array<i32>} : memref<2x10x256xbf16, #tpu.memory_space<vmem>>, vector<1x2x256xbf16>,
    %39 = vector.extract_strided_slice %22 {offsets = [8, 0], sizes = [2, 256], strides = [1, 1]} : vector<16x256xbf16> to vector<2x256xbf16>
    %c1_30 = arith.constant 1 : index
    %c4_31 = arith.constant 4 : index
    %c0_32 = arith.constant 0 : index
    %40 = vector.load %arg8[%c1_30, %c4_31, %c0_32] : memref<2x10x256xbf16, #tpu.memory_space<vmem>>, vector<1x2x256xbf16>
    %41 = vector.shape_cast %40 : vector<1x2x256xbf16> to vector<2x256xbf16>
    %42 = vector.shape_cast %39 : vector<2x256xbf16> to vector<1x2x256xbf16>
    tpu.vector_store %arg8[%c1_30, %c4_31, %c0_32], %42 {strides = array<i32>} : memref<2x10x256xbf16, #tpu.memory_space<vmem>>, vector<1x2x256xbf16>,
    %43 = vector.extract_strided_slice %22 {offsets = [10, 0], sizes = [2, 256], strides = [1, 1]} : vector<16x256xbf16> to vector<2x256xbf16>
    %c0_33 = arith.constant 0 : index
    %c6 = arith.constant 6 : index
    %c0_34 = arith.constant 0 : index
    %44 = vector.load %arg8[%c0_33, %c6, %c0_34] : memref<2x10x256xbf16, #tpu.memory_space<vmem>>, vector<1x2x256xbf16>
    %45 = vector.shape_cast %44 : vector<1x2x256xbf16> to vector<2x256xbf16>
    %46 = vector.shape_cast %43 : vector<2x256xbf16> to vector<1x2x256xbf16>
    tpu.vector_store %arg8[%c0_33, %c6, %c0_34], %46 {strides = array<i32>} : memref<2x10x256xbf16, #tpu.memory_space<vmem>>, vector<1x2x256xbf16>,
    %47 = vector.extract_strided_slice %22 {offsets = [12, 0], sizes = [2, 256], strides = [1, 1]} : vector<16x256xbf16> to vector<2x256xbf16>
    %c1_35 = arith.constant 1 : index
    %c6_36 = arith.constant 6 : index
    %c0_37 = arith.constant 0 : index
    %48 = vector.load %arg8[%c1_35, %c6_36, %c0_37] : memref<2x10x256xbf16, #tpu.memory_space<vmem>>, vector<1x2x256xbf16>
    %49 = vector.shape_cast %48 : vector<1x2x256xbf16> to vector<2x256xbf16>
    %50 = vector.shape_cast %47 : vector<2x256xbf16> to vector<1x2x256xbf16>
    tpu.vector_store %arg8[%c1_35, %c6_36, %c0_37], %50 {strides = array<i32>} : memref<2x10x256xbf16, #tpu.memory_space<vmem>>, vector<1x2x256xbf16>,
    %51 = vector.extract_strided_slice %22 {offsets = [14, 0], sizes = [2, 256], strides = [1, 1]} : vector<16x256xbf16> to vector<2x256xbf16>
    %c0_38 = arith.constant 0 : index
    %c8 = arith.constant 8 : index
    %c0_39 = arith.constant 0 : index
    %52 = vector.load %arg8[%c0_38, %c8, %c0_39] : memref<2x10x256xbf16, #tpu.memory_space<vmem>>, vector<1x2x256xbf16>
    %53 = vector.shape_cast %52 : vector<1x2x256xbf16> to vector<2x256xbf16>
    %54 = vector.shape_cast %51 : vector<2x256xbf16> to vector<1x2x256xbf16>
    tpu.vector_store %arg8[%c0_38, %c8, %c0_39], %54 {strides = array<i32>} : memref<2x10x256xbf16, #tpu.memory_space<vmem>>, vector<1x2x256xbf16>,
    %c0_40 = arith.constant 0 : index
    %c0_41 = arith.constant 0 : index
    %c0_42 = arith.constant 0 : index
    %55 = vector.load %arg8[%c0_40, %c0_41, %c0_42] : memref<2x10x256xbf16, #tpu.memory_space<vmem>>, vector<1x8x256xbf16>
    %56 = vector.shape_cast %55 : vector<1x8x256xbf16> to vector<8x256xbf16>
    %c1_43 = arith.constant 1 : index
    %c0_44 = arith.constant 0 : index
    %c0_45 = arith.constant 0 : index
    %57 = vector.load %arg8[%c1_43, %c0_44, %c0_45] : memref<2x10x256xbf16, #tpu.memory_space<vmem>>, vector<1x8x256xbf16>
    %58 = vector.shape_cast %57 : vector<1x8x256xbf16> to vector<8x256xbf16>
    %c0_46 = arith.constant 0 : index
    %c2_47 = arith.constant 2 : index
    %c0_48 = arith.constant 0 : index
    %59 = vector.load %arg8[%c0_46, %c2_47, %c0_48] : memref<2x10x256xbf16, #tpu.memory_space<vmem>>, vector<1x8x256xbf16>
    %60 = vector.shape_cast %59 : vector<1x8x256xbf16> to vector<8x256xbf16>
    %61 = tpu.concatenate %56, %58, %60 in 1 : vector<8x256xbf16>, vector<8x256xbf16>, vector<8x256xbf16> -> vector<8x768xbf16>
    %c0_49 = arith.constant 0 : index
    %c0_50 = arith.constant 0 : index
    %62 = vector.load %arg3[%c0_49, %c0_50] : memref<768x256xbf16, #tpu.memory_space<vmem>>, vector<768x256xbf16>
    %cst_51 = arith.constant dense<0.000000e+00> : vector<8x256xf32>
    %63 = tpu.matmul %61, %62, %cst_51 {dimension_numbers = #tpu.dot_dimension_numbers<[1], [0], [0], [1], [0, 0, 1, 1], [], []>} : vector<8x768xbf16>, vector<768x256xbf16>, vector<8x256xf32> -> vector<8x256xf32>
    %c0_52 = arith.constant 0 : index
    %c0_53 = arith.constant 0 : index
    %64 = vector.load %arg4[%c0_52, %c0_53] : memref<1x256xf32, #tpu.memory_space<vmem>>, vector<1x256xf32>
    %65 = vector.broadcast %64 : vector<1x256xf32> to vector<8x256xf32>
    %66 = arith.addf %63, %65 : vector<8x256xf32>
    %cst_54 = arith.constant 0.000000e+00 : f32
    %67 = vector.broadcast %cst_54 : f32 to vector<8x256xf32>
    %68 = arith.maximumf %66, %67 : vector<8x256xf32>
    %69 = arith.truncf %68 : vector<8x256xf32> to vector<8x256xbf16>
    %70 = vector.extract_strided_slice %69 {offsets = [0, 0], sizes = [2, 256], strides = [1, 1]} : vector<8x256xbf16> to vector<2x256xbf16>
    %c1_55 = arith.constant 1 : index
    %c0_56 = arith.constant 0 : index
    %c0_57 = arith.constant 0 : index
    %71 = vector.load %arg9[%c1_55, %c0_56, %c0_57] : memref<2x6x256xbf16, #tpu.memory_space<vmem>>, vector<1x2x256xbf16>
    %72 = vector.shape_cast %71 : vector<1x2x256xbf16> to vector<2x256xbf16>
    %73 = vector.shape_cast %70 : vector<2x256xbf16> to vector<1x2x256xbf16>
    tpu.vector_store %arg9[%c1_55, %c0_56, %c0_57], %73 {strides = array<i32>} : memref<2x6x256xbf16, #tpu.memory_space<vmem>>, vector<1x2x256xbf16>,
    %74 = vector.extract_strided_slice %69 {offsets = [2, 0], sizes = [2, 256], strides = [1, 1]} : vector<8x256xbf16> to vector<2x256xbf16>
    %c0_58 = arith.constant 0 : index
    %c2_59 = arith.constant 2 : index
    %c0_60 = arith.constant 0 : index
    %75 = vector.load %arg9[%c0_58, %c2_59, %c0_60] : memref<2x6x256xbf16, #tpu.memory_space<vmem>>, vector<1x2x256xbf16>
    %76 = vector.shape_cast %75 : vector<1x2x256xbf16> to vector<2x256xbf16>
    %77 = vector.shape_cast %74 : vector<2x256xbf16> to vector<1x2x256xbf16>
    tpu.vector_store %arg9[%c0_58, %c2_59, %c0_60], %77 {strides = array<i32>} : memref<2x6x256xbf16, #tpu.memory_space<vmem>>, vector<1x2x256xbf16>,
    %78 = vector.extract_strided_slice %69 {offsets = [4, 0], sizes = [2, 256], strides = [1, 1]} : vector<8x256xbf16> to vector<2x256xbf16>
    %c1_61 = arith.constant 1 : index
    %c2_62 = arith.constant 2 : index
    %c0_63 = arith.constant 0 : index
    %79 = vector.load %arg9[%c1_61, %c2_62, %c0_63] : memref<2x6x256xbf16, #tpu.memory_space<vmem>>, vector<1x2x256xbf16>
    %80 = vector.shape_cast %79 : vector<1x2x256xbf16> to vector<2x256xbf16>
    %81 = vector.shape_cast %78 : vector<2x256xbf16> to vector<1x2x256xbf16>
    tpu.vector_store %arg9[%c1_61, %c2_62, %c0_63], %81 {strides = array<i32>} : memref<2x6x256xbf16, #tpu.memory_space<vmem>>, vector<1x2x256xbf16>,
    %82 = vector.extract_strided_slice %69 {offsets = [6, 0], sizes = [2, 256], strides = [1, 1]} : vector<8x256xbf16> to vector<2x256xbf16>
    %c0_64 = arith.constant 0 : index
    %c4_65 = arith.constant 4 : index
    %c0_66 = arith.constant 0 : index
    %83 = vector.load %arg9[%c0_64, %c4_65, %c0_66] : memref<2x6x256xbf16, #tpu.memory_space<vmem>>, vector<1x2x256xbf16>
    %84 = vector.shape_cast %83 : vector<1x2x256xbf16> to vector<2x256xbf16>
    %85 = vector.shape_cast %82 : vector<2x256xbf16> to vector<1x2x256xbf16>
    tpu.vector_store %arg9[%c0_64, %c4_65, %c0_66], %85 {strides = array<i32>} : memref<2x6x256xbf16, #tpu.memory_space<vmem>>, vector<1x2x256xbf16>,
    %c0_67 = arith.constant 0 : index
    %c0_68 = arith.constant 0 : index
    %c0_69 = arith.constant 0 : index
    %86 = vector.load %arg9[%c0_67, %c0_68, %c0_69] : memref<2x6x256xbf16, #tpu.memory_space<vmem>>, vector<1x4x256xbf16>
    %87 = vector.shape_cast %86 : vector<1x4x256xbf16> to vector<4x256xbf16>
    %c1_70 = arith.constant 1 : index
    %c0_71 = arith.constant 0 : index
    %c0_72 = arith.constant 0 : index
    %88 = vector.load %arg9[%c1_70, %c0_71, %c0_72] : memref<2x6x256xbf16, #tpu.memory_space<vmem>>, vector<1x4x256xbf16>
    %89 = vector.shape_cast %88 : vector<1x4x256xbf16> to vector<4x256xbf16>
    %c0_73 = arith.constant 0 : index
    %c2_74 = arith.constant 2 : index
    %c0_75 = arith.constant 0 : index
    %90 = vector.load %arg9[%c0_73, %c2_74, %c0_75] : memref<2x6x256xbf16, #tpu.memory_space<vmem>>, vector<1x4x256xbf16>
    %91 = vector.shape_cast %90 : vector<1x4x256xbf16> to vector<4x256xbf16>
    %92 = tpu.concatenate %87, %89, %91 in 1 : vector<4x256xbf16>, vector<4x256xbf16>, vector<4x256xbf16> -> vector<4x768xbf16>
    %c0_76 = arith.constant 0 : index
    %c0_77 = arith.constant 0 : index
    %93 = vector.load %arg5[%c0_76, %c0_77] : memref<768x128xbf16, #tpu.memory_space<vmem>>, vector<768x128xbf16>
    %cst_78 = arith.constant dense<0.000000e+00> : vector<4x128xf32>
    %94 = tpu.matmul %92, %93, %cst_78 {dimension_numbers = #tpu.dot_dimension_numbers<[1], [0], [0], [1], [0, 0, 1, 1], [], []>} : vector<4x768xbf16>, vector<768x128xbf16>, vector<4x128xf32> -> vector<4x128xf32>
    %c0_79 = arith.constant 0 : index
    %c0_80 = arith.constant 0 : index
    %95 = vector.load %arg6[%c0_79, %c0_80] : memref<1x128xf32, #tpu.memory_space<vmem>>, vector<1x128xf32>
    %96 = vector.broadcast %95 : vector<1x128xf32> to vector<4x128xf32>
    %97 = arith.addf %94, %96 : vector<4x128xf32>
    %cst_81 = arith.constant 0.000000e+00 : f32
    %98 = vector.broadcast %cst_81 : f32 to vector<4x128xf32>
    %99 = arith.maximumf %97, %98 : vector<4x128xf32>
    %c0_82 = arith.constant 0 : index
    %c0_83 = arith.constant 0 : index
    %100 = vector.load %arg7[%c0_82, %c0_83] : memref<4x128xf32, #tpu.memory_space<vmem>>, vector<4x128xf32>
    tpu.vector_store %arg7[%c0_82, %c0_83], %99 {strides = array<i32>} : memref<4x128xf32, #tpu.memory_space<vmem>>, vector<4x128xf32>,
    return
  }
}

</mosaic_0001>

<llo_original>
// kernel: forward.1
$region0: #{forward.1}
  #allocation0 [shape = 'u32[]', space=smem, size = 0x4, offset = 0x4, fixed_abs, tag = 'smem constant byte address 0x4 - core index']
  #allocation1 [shape = 'u32[144,128]{1,0:T(1,128)}', space=vmem, size = 0x12000, scoped, tag = 'internal scratch']
  #allocation2 [shape = 'bf16[2,10,256]{2,1,0:T(8,128)(2,1)}', space=vmem, size = 0x4000, scoped, tag = 'scratch operand']
  #allocation3 [shape = 'bf16[2,6,256]{2,1,0:T(8,128)(2,1)}', space=vmem, size = 0x2000, scoped, tag = 'scratch operand']
  %s0 = inlined_call_operand.vmem [shape: bf16[2,18,128], index: 0, kind: input, shape index: {}]
  %s1 = inlined_call_operand.vmem [shape: bf16[384,256], index: 1, kind: input, shape index: {}]
  %s2 = inlined_call_operand.vmem [shape: f32[1,256], index: 2, kind: input, shape index: {}]
  %s3 = inlined_call_operand.hbm [shape: bf16[768,256], index: 3, kind: input, shape index: {}]
  %s4 = inlined_call_operand.vmem [shape: f32[1,256], index: 4, kind: input, shape index: {}]
  %s5 = inlined_call_operand.hbm [shape: bf16[768,128], index: 5, kind: input, shape index: {}]
  %s6 = inlined_call_operand.vmem [shape: f32[1,128], index: 6, kind: input, shape index: {}]
  %s7 = inlined_call_operand.vmem [shape: f32[4,128], index: 7, kind: output, shape index: {}]
  %s8 = sld [smem:[#allocation0]]
  $region46: #{forward.1} parent=0
    _
  %s10 = ssub.s32 1, %s8
  %s11 = scalar_select 0, %s10, %s8
  $region1: #{forward.1} parent=0
    #allocation4 [shape = 'u8[393216]{0}', space=vmem, size = 0x60000, scoped, tag = 'input window, operand 3, single buffered']
    #allocation5 [shape = 's32[1]{0}', space=sflag, size = 0x4, scoped, tag = 'scoped memory for forward.1']
    #allocation6 [shape = 'u8[196608]{0}', space=vmem, size = 0x30000, scoped, tag = 'input window, operand 5, single buffered']
    #allocation7 [shape = 's32[1]{0}', space=sflag, size = 0x4, scoped, tag = 'scoped memory for forward.1']
    %12 = vsyncpa [#allocation5], 0
    %13 = vsyncpa [#allocation7], 0
    // Predicated region
    $region2: #{forward.1} parent=1 // pred_check
      _
    $region3: #{forward.1} parent=1 // pred_check_branch
      %15 = sbr.rel (0) target = $region5
    $region4: #{forward.1} parent=1 // pred_region
      _
    $region5: #{forward.1} parent=1 // pred_fallthru
      _
    // Predicated region
    $region6: #{forward.1} parent=1 // pred_check
      _
    $region7: #{forward.1} parent=1 // pred_check_branch
      %17 = sbr.rel (0) target = $region9
    $region8: #{forward.1} parent=1 // pred_region
      _
    $region9: #{forward.1} parent=1 // pred_fallthru
      _
    // Predicated region
    $region10: #{forward.1} parent=1 // pred_check
      _
    $region11: #{forward.1} parent=1 // pred_check_branch
      %19 = sbr.rel (0) target = $region13
    $region12: #{forward.1} parent=1 // pred_region
      _
    $region13: #{forward.1} parent=1 // pred_fallthru
      _
    // Predicated region
    $region14: #{forward.1} parent=1 // pred_check
      _
    $region15: #{forward.1} parent=1 // pred_check_branch
      %21 = sbr.rel (0) target = $region17
    $region16: #{forward.1} parent=1 // pred_region
      %s23 = ssub.s32 12288, 12288
      %24 = vsyncadd [#allocation5], %s23
      %s25 = sshll.u32 [#allocation4], 4
      %s26 = int_to_ptr.vmem [resolvable:$true] %s25
      %31 = dma.hbm_to_vmem [thread:$0]  %s3, 12288, %s26, [#allocation5], 128, 128, 8
    $region17: #{forward.1} parent=1 // pred_fallthru
      _
    // Predicated region
    $region18: #{forward.1} parent=1 // pred_check
      _
    $region19: #{forward.1} parent=1 // pred_check_branch
      %33 = sbr.rel (0) target = $region21
    $region20: #{forward.1} parent=1 // pred_region
      _
    $region21: #{forward.1} parent=1 // pred_fallthru
      _
    // Predicated region
    $region22: #{forward.1} parent=1 // pred_check
      _
    $region23: #{forward.1} parent=1 // pred_check_branch
      %35 = sbr.rel (0) target = $region25
    $region24: #{forward.1} parent=1 // pred_region
      %s37 = ssub.s32 6144, 6144
      %38 = vsyncadd [#allocation7], %s37
      %s39 = sshll.u32 [#allocation6], 4
      %s40 = int_to_ptr.vmem [resolvable:$true] %s39
      %45 = dma.hbm_to_vmem [thread:$0]  %s5, 6144, %s40, [#allocation7], 64, 64, 4
    $region25: #{forward.1} parent=1 // pred_fallthru
      _
    // Predicated region
    $region26: #{forward.1} parent=1 // pred_check
      _
    $region27: #{forward.1} parent=1 // pred_check_branch
      %47 = sbr.rel (0) target = $region29
    $region28: #{forward.1} parent=1 // pred_region
      _
    $region29: #{forward.1} parent=1 // pred_fallthru
      _
    // Predicated region
    $region30: #{forward.1} parent=1 // pred_check
      _
    $region31: #{forward.1} parent=1 // pred_check_branch
      %49 = sbr.rel (0) target = $region33
    $region32: #{forward.1} parent=1 // pred_region
      %50 = dma.done [#allocation5], 12288
    $region33: #{forward.1} parent=1 // pred_fallthru
      _
    // Predicated region
    $region34: #{forward.1} parent=1 // pred_check
      _
    $region35: #{forward.1} parent=1 // pred_check_branch
      %52 = sbr.rel (0) target = $region37
    $region36: #{forward.1} parent=1 // pred_region
      %53 = dma.done [#allocation7], 6144
    $region37: #{forward.1} parent=1 // pred_fallthru
      _
    %55 = vst [vmem:[#allocation2] sm:$0x11] 0
    %56 = vst [vmem:[#allocation3] sm:$0x11] 0
    %v57 = vld [vmem:[%s0] sm:$0xf]
    %v58 = vld [vmem:[%s0 + $0x4] sm:$0xf]
    %s59 = scalar_lea.vmem %s0, 12
    %v60 = vld [vmem:[%s59] sm:$0xf]
    %v61 = vld [vmem:[%s59 + $0x4] sm:$0xf]
    %v62 = vld [vmem:[%s0] sm:$0xe]
    %v63 = vld [vmem:[%s0 + $0x8] sm:$0x1]
    %v66 = vunpack.c.l.b16 %v57
    %v67 = vunpack.c.l.b16 %v58
    %v68 = vpack.c.b16 %v67, %v66
    %v72 = vunpack.c.l.b16 %v60
    %v73 = vunpack.c.l.b16 %v61
    %v74 = vpack.c.b16 %v73, %v72
    %v78 = vunpack.c.l.b16 %v62
    %v79 = vunpack.c.l.b16 %v63
    %v80 = vpack.c.b16 %v67, %v78
    %v81 = vpack.c.b16 %v79, %v79
    %vm82 = vcmask 1046528
    %v83 = vrot.slane %v80, 1
    %v84 = vrot.slane %v81, 1
    %v85 = vsel %vm82, %v83, %v84
    %v87 = vld [vmem:[%s1] sm:$0xff]
    %v88 = vld [vmem:[%s1 + $0x8] sm:$0xff]
    %v89 = vld [vmem:[%s1 + $0x10] sm:$0xff]
    %v90 = vld [vmem:[%s1 + $0x18] sm:$0xff]
    %v91 = vld [vmem:[%s1 + $0x20] sm:$0xff]
    %v92 = vld [vmem:[%s1 + $0x28] sm:$0xff]
    %v93 = vld [vmem:[%s1 + $0x30] sm:$0xff]
    %v94 = vld [vmem:[%s1 + $0x38] sm:$0xff]
    %v95 = vld [vmem:[%s1 + $0x40] sm:$0xff]
    %v96 = vld [vmem:[%s1 + $0x48] sm:$0xff]
    %v97 = vld [vmem:[%s1 + $0x50] sm:$0xff]
    %v98 = vld [vmem:[%s1 + $0x58] sm:$0xff]
    %v99 = vld [vmem:[%s1 + $0x60] sm:$0xff]
    %v100 = vld [vmem:[%s1 + $0x68] sm:$0xff]
    %v101 = vld [vmem:[%s1 + $0x70] sm:$0xff]
    %v102 = vld [vmem:[%s1 + $0x78] sm:$0xff]
    %v103 = vld [vmem:[%s1 + $0x80] sm:$0xff]
    %v104 = vld [vmem:[%s1 + $0x88] sm:$0xff]
    %v105 = vld [vmem:[%s1 + $0x90] sm:$0xff]
    %v106 = vld [vmem:[%s1 + $0x98] sm:$0xff]
    %v107 = vld [vmem:[%s1 + $0xa0] sm:$0xff]
    %v108 = vld [vmem:[%s1 + $0xa8] sm:$0xff]
    %v109 = vld [vmem:[%s1 + $0xb0] sm:$0xff]
    %v110 = vld [vmem:[%s1 + $0xb8] sm:$0xff]
    %v111 = vld [vmem:[%s1 + $0xc0] sm:$0xff]
    %v112 = vld [vmem:[%s1 + $0xc8] sm:$0xff]
    %v113 = vld [vmem:[%s1 + $0xd0] sm:$0xff]
    %v114 = vld [vmem:[%s1 + $0xd8] sm:$0xff]
    %v115 = vld [vmem:[%s1 + $0xe0] sm:$0xff]
    %v116 = vld [vmem:[%s1 + $0xe8] sm:$0xff]
    %v117 = vld [vmem:[%s1 + $0xf0] sm:$0xff]
    %v118 = vld [vmem:[%s1 + $0xf8] sm:$0xff]
    %v119 = vld [vmem:[%s1 + $0x100] sm:$0xff]
    %v120 = vld [vmem:[%s1 + $0x108] sm:$0xff]
    %v121 = vld [vmem:[%s1 + $0x110] sm:$0xff]
    %v122 = vld [vmem:[%s1 + $0x118] sm:$0xff]
    %v123 = vld [vmem:[%s1 + $0x120] sm:$0xff]
    %v124 = vld [vmem:[%s1 + $0x128] sm:$0xff]
    %v125 = vld [vmem:[%s1 + $0x130] sm:$0xff]
    %v126 = vld [vmem:[%s1 + $0x138] sm:$0xff]
    %v127 = vld [vmem:[%s1 + $0x140] sm:$0xff]
    %v128 = vld [vmem:[%s1 + $0x148] sm:$0xff]
    %v129 = vld [vmem:[%s1 + $0x150] sm:$0xff]
    %v130 = vld [vmem:[%s1 + $0x158] sm:$0xff]
    %v131 = vld [vmem:[%s1 + $0x160] sm:$0xff]
    %v132 = vld [vmem:[%s1 + $0x168] sm:$0xff]
    %v133 = vld [vmem:[%s1 + $0x170] sm:$0xff]
    %v134 = vld [vmem:[%s1 + $0x178] sm:$0xff]
    %v135 = vld [vmem:[%s2] sm:$0x3]
    %v137 = vlaneseq
    %v138 = vshrl.u32 %v137, 7
    %v139 = vsub.s32 0, %v138
    %v140 = vrot.slane %v135, %v139
    %v141 = vlaneseq
    %v142 = vshrl.u32 %v141, 7
    %v143 = vsub.s32 1, %v142
    %v144 = vrot.slane %v135, %v143
    %v195 = vunpack.c.l.b16 %v87
    %v196 = vunpack.c.h.b16 %v87
    %v197 = vunpack.c.l.b16 %v88
    %v198 = vunpack.c.h.b16 %v88
    %v199 = vunpack.c.l.b16 %v89
    %v200 = vunpack.c.h.b16 %v89
    %v201 = vunpack.c.l.b16 %v90
    %v202 = vunpack.c.h.b16 %v90
    %v203 = vunpack.c.l.b16 %v91
    %v204 = vunpack.c.h.b16 %v91
    %v205 = vunpack.c.l.b16 %v92
    %v206 = vunpack.c.h.b16 %v92
    %v207 = vunpack.c.l.b16 %v93
    %v208 = vunpack.c.h.b16 %v93
    %v209 = vunpack.c.l.b16 %v94
    %v210 = vunpack.c.h.b16 %v94
    %v211 = vunpack.c.l.b16 %v95
    %v212 = vunpack.c.h.b16 %v95
    %v213 = vunpack.c.l.b16 %v96
    %v214 = vunpack.c.h.b16 %v96
    %v215 = vunpack.c.l.b16 %v97
    %v216 = vunpack.c.h.b16 %v97
    %v217 = vunpack.c.l.b16 %v98
    %v218 = vunpack.c.h.b16 %v98
    %v219 = vunpack.c.l.b16 %v99
    %v220 = vunpack.c.h.b16 %v99
    %v221 = vunpack.c.l.b16 %v100
    %v222 = vunpack.c.h.b16 %v100
    %v223 = vunpack.c.l.b16 %v101
    %v224 = vunpack.c.h.b16 %v101
    %v225 = vunpack.c.l.b16 %v102
    %v226 = vunpack.c.h.b16 %v102
    %v227 = vunpack.c.l.b16 %v103
    %v228 = vunpack.c.h.b16 %v103
    %v229 = vunpack.c.l.b16 %v104
    %v230 = vunpack.c.h.b16 %v104
    %v231 = vunpack.c.l.b16 %v105
    %v232 = vunpack.c.h.b16 %v105
    %v233 = vunpack.c.l.b16 %v106
    %v234 = vunpack.c.h.b16 %v106
    %v235 = vunpack.c.l.b16 %v107
    %v236 = vunpack.c.h.b16 %v107
    %v237 = vunpack.c.l.b16 %v108
    %v238 = vunpack.c.h.b16 %v108
    %v239 = vunpack.c.l.b16 %v109
    %v240 = vunpack.c.h.b16 %v109
    %v241 = vunpack.c.l.b16 %v110
    %v242 = vunpack.c.h.b16 %v110
    %v243 = vunpack.c.l.b16 %v111
    %v244 = vunpack.c.h.b16 %v111
    %v245 = vunpack.c.l.b16 %v112
    %v246 = vunpack.c.h.b16 %v112
    %v247 = vunpack.c.l.b16 %v113
    %v248 = vunpack.c.h.b16 %v113
    %v249 = vunpack.c.l.b16 %v114
    %v250 = vunpack.c.h.b16 %v114
    %v251 = vunpack.c.l.b16 %v115
    %v252 = vunpack.c.h.b16 %v115
    %v253 = vunpack.c.l.b16 %v116
    %v254 = vunpack.c.h.b16 %v116
    %v255 = vunpack.c.l.b16 %v117
    %v256 = vunpack.c.h.b16 %v117
    %v257 = vunpack.c.l.b16 %v118
    %v258 = vunpack.c.h.b16 %v118
    %v259 = vunpack.c.l.b16 %v119
    %v260 = vunpack.c.h.b16 %v119
    %v261 = vunpack.c.l.b16 %v120
    %v262 = vunpack.c.h.b16 %v120
    %v263 = vunpack.c.l.b16 %v121
    %v264 = vunpack.c.h.b16 %v121
    %v265 = vunpack.c.l.b16 %v122
    %v266 = vunpack.c.h.b16 %v122
    %v267 = vunpack.c.l.b16 %v123
    %v268 = vunpack.c.h.b16 %v123
    %v269 = vunpack.c.l.b16 %v124
    %v270 = vunpack.c.h.b16 %v124
    %v271 = vunpack.c.l.b16 %v125
    %v272 = vunpack.c.h.b16 %v125
    %v273 = vunpack.c.l.b16 %v126
    %v274 = vunpack.c.h.b16 %v126
    %v275 = vunpack.c.l.b16 %v127
    %v276 = vunpack.c.h.b16 %v127
    %v277 = vunpack.c.l.b16 %v128
    %v278 = vunpack.c.h.b16 %v128
    %v279 = vunpack.c.l.b16 %v129
    %v280 = vunpack.c.h.b16 %v129
    %v281 = vunpack.c.l.b16 %v130
    %v282 = vunpack.c.h.b16 %v130
    %v283 = vunpack.c.l.b16 %v131
    %v284 = vunpack.c.h.b16 %v131
    %v285 = vunpack.c.l.b16 %v132
    %v286 = vunpack.c.h.b16 %v132
    %v287 = vunpack.c.l.b16 %v133
    %v288 = vunpack.c.h.b16 %v133
    %v289 = vunpack.c.l.b16 %v134
    %v290 = vunpack.c.h.b16 %v134
    %v291 = vpack.c.b16 %v197, %v195
    %v292 = vpack.c.b16 %v198, %v196
    %v293 = vpack.c.b16 %v201, %v199
    %v294 = vpack.c.b16 %v202, %v200
    %v295 = vpack.c.b16 %v205, %v203
    %v296 = vpack.c.b16 %v206, %v204
    %v297 = vpack.c.b16 %v209, %v207
    %v298 = vpack.c.b16 %v210, %v208
    %v299 = vpack.c.b16 %v213, %v211
    %v300 = vpack.c.b16 %v214, %v212
    %v301 = vpack.c.b16 %v217, %v215
    %v302 = vpack.c.b16 %v218, %v216
    %v303 = vpack.c.b16 %v221, %v219
    %v304 = vpack.c.b16 %v222, %v220
    %v305 = vpack.c.b16 %v225, %v223
    %v306 = vpack.c.b16 %v226, %v224
    %v307 = vpack.c.b16 %v229, %v227
    %v308 = vpack.c.b16 %v230, %v228
    %v309 = vpack.c.b16 %v233, %v231
    %v310 = vpack.c.b16 %v234, %v232
    %v311 = vpack.c.b16 %v237, %v235
    %v312 = vpack.c.b16 %v238, %v236
    %v313 = vpack.c.b16 %v241, %v239
    %v314 = vpack.c.b16 %v242, %v240
    %v315 = vpack.c.b16 %v245, %v243
    %v316 = vpack.c.b16 %v246, %v244
    %v317 = vpack.c.b16 %v249, %v247
    %v318 = vpack.c.b16 %v250, %v248
    %v319 = vpack.c.b16 %v253, %v251
    %v320 = vpack.c.b16 %v254, %v252
    %v321 = vpack.c.b16 %v257, %v255
    %v322 = vpack.c.b16 %v258, %v256
    %v323 = vpack.c.b16 %v261, %v259
    %v324 = vpack.c.b16 %v262, %v260
    %v325 = vpack.c.b16 %v265, %v263
    %v326 = vpack.c.b16 %v266, %v264
    %v327 = vpack.c.b16 %v269, %v267
    %v328 = vpack.c.b16 %v270, %v268
    %v329 = vpack.c.b16 %v273, %v271
    %v330 = vpack.c.b16 %v274, %v272
    %v331 = vpack.c.b16 %v277, %v275
    %v332 = vpack.c.b16 %v278, %v276
    %v333 = vpack.c.b16 %v281, %v279
    %v334 = vpack.c.b16 %v282, %v280
    %v335 = vpack.c.b16 %v285, %v283
    %v336 = vpack.c.b16 %v286, %v284
    %v337 = vpack.c.b16 %v289, %v287
    %v338 = vpack.c.b16 %v290, %v288
    %387 = vmatprep.subr.bf16.mxu0 %v292
    %388 = vmatpush1.bf16.msra.mxu0 %v291
    %389 = vmatprep.subr.bf16.mxu0 %v294
    %390 = vmatpush1.bf16.msra.mxu0 %v293
    %391 = vmatprep.subr.bf16.mxu0 %v296
    %392 = vmatpush1.bf16.msra.mxu0 %v295
    %393 = vmatprep.subr.bf16.mxu0 %v298
    %394 = vmatpush1.bf16.msra.mxu0 %v297
    %395 = vmatprep.subr.bf16.mxu0 %v300
    %396 = vmatpush1.bf16.msra.mxu0 %v299
    %397 = vmatprep.subr.bf16.mxu0 %v302
    %398 = vmatpush1.bf16.msra.mxu0 %v301
    %399 = vmatprep.subr.bf16.mxu0 %v304
    %400 = vmatpush1.bf16.msra.mxu0 %v303
    %401 = vmatprep.subr.bf16.mxu0 %v306
    %402 = vmatpush1.bf16.msra.mxu0 %v305
    %403 = vmatprep.subr.bf16.mxu0 %v308
    %404 = vmatpush1.bf16.msra.mxu0 %v307
    %405 = vmatprep.subr.bf16.mxu0 %v310
    %406 = vmatpush1.bf16.msra.mxu0 %v309
    %407 = vmatprep.subr.bf16.mxu0 %v312
    %408 = vmatpush1.bf16.msra.mxu0 %v311
    %409 = vmatprep.subr.bf16.mxu0 %v314
    %410 = vmatpush1.bf16.msra.mxu0 %v313
    %411 = vmatprep.subr.bf16.mxu0 %v316
    %412 = vmatpush1.bf16.msra.mxu0 %v315
    %413 = vmatprep.subr.bf16.mxu0 %v318
    %414 = vmatpush1.bf16.msra.mxu0 %v317
    %415 = vmatprep.subr.bf16.mxu0 %v320
    %416 = vmatpush1.bf16.msra.mxu0 %v319
    %417 = vmatprep.subr.bf16.mxu0 %v322
    %418 = vmatpush1.bf16.msra.mxu0 %v321
    %419 = vmatprep.mubr.bf16.mxu0 %v74
    %420 = vmatmul.mubr.bf16.gmra.mrb[0].mxu0 %v68
    %v421 = vpop.f32.mrb[0].mxu0
    %v422 = vadd.f32 %v140, %v421
    %v423 = vpop.f32.mrb[0].mxu0
    %v424 = vadd.f32 %v144, %v423
    %v425 = vpop.f32.mrb[0].mxu0
    %v426 = vadd.f32 %v140, %v425
    %v427 = vpop.f32.mrb[0].mxu0
    %v428 = vadd.f32 %v144, %v427
    %429 = vdwg.mxu0
    %430 = vmatprep.subr.bf16.mxu0 %v324
    %431 = vmatpush1.bf16.msra.mxu0 %v323
    %432 = vmatprep.subr.bf16.mxu0 %v326
    %433 = vmatpush1.bf16.msra.mxu0 %v325
    %434 = vmatprep.subr.bf16.mxu0 %v328
    %435 = vmatpush1.bf16.msra.mxu0 %v327
    %436 = vmatprep.subr.bf16.mxu0 %v330
    %437 = vmatpush1.bf16.msra.mxu0 %v329
    %438 = vmatprep.subr.bf16.mxu0 %v332
    %439 = vmatpush1.bf16.msra.mxu0 %v331
    %440 = vmatprep.subr.bf16.mxu0 %v334
    %441 = vmatpush1.bf16.msra.mxu0 %v333
    %442 = vmatprep.subr.bf16.mxu0 %v336
    %443 = vmatpush1.bf16.msra.mxu0 %v335
    %444 = vmatprep.subr.bf16.mxu0 %v338
    %445 = vmatpush1.bf16.msra.mxu0 %v337
    %446 = vmatprep.subr.bf16.mxu0 0
    %447 = vmatpush1.bf16.msra.mxu0 0
    %448 = vmatprep.subr.bf16.mxu0 0
    %449 = vmatpush1.bf16.msra.mxu0 0
    %450 = vmatprep.subr.bf16.mxu0 0
    %451 = vmatpush1.bf16.msra.mxu0 0
    %452 = vmatprep.subr.bf16.mxu0 0
    %453 = vmatpush1.bf16.msra.mxu0 0
    %454 = vmatprep.subr.bf16.mxu0 0
    %455 = vmatpush1.bf16.msra.mxu0 0
    %456 = vmatprep.subr.bf16.mxu0 0
    %457 = vmatpush1.bf16.msra.mxu0 0
    %458 = vmatprep.subr.bf16.mxu0 0
    %459 = vmatpush1.bf16.msra.mxu0 0
    %460 = vmatprep.subr.bf16.mxu0 0
    %461 = vmatpush1.bf16.msra.mxu0 0
    %462 = vmatprep.mubr.bf16.mxu0 0
    %463 = vmatmul.mubr.bf16.gmra.mrb[0].mxu0 %v85
    %v464 = vpop.f32.mrb[0].mxu0
    %v465 = vadd.f32 %v422, %v464
    %v466 = vpop.f32.mrb[0].mxu0
    %v467 = vadd.f32 %v424, %v466
    %v468 = vpop.f32.mrb[0].mxu0
    %v469 = vadd.f32 %v426, %v468
    %v470 = vpop.f32.mrb[0].mxu0
    %v471 = vadd.f32 %v428, %v470
    %472 = vdwg.mxu0
    %v473 = vmax.f32 %v465, 0.0
    %v474 = vmax.f32 %v467, 0.0
    %v475 = vmax.f32 %v469, 0.0
    %v476 = vmax.f32 %v471, 0.0
    %v477 = vpack.c.bf16 %v475, %v473
    %v478 = vpack.c.bf16 %v476, %v474
    %v481 = vunpack.c.l.b16 %v477
    %v482 = vunpack.c.l.b16 %v478
    %v483 = vpack.c.b16 %v482, %v481
    %s485 = scalar_lea.vmem [#allocation2], 16
    %486 = vst [vmem:[%s485] sm:$0x11] %v483
    %487 = vst [vmem:[#allocation2] sm:$0x22] %v483
    %v488 = vrot.slane %v483, 5
    %v489 = vrot.slane %v488, 4
    %491 = vst [vmem:[%s485] sm:$0x22] %v489
    %492 = vst [vmem:[#allocation2] sm:$0x44] %v489
    %v493 = vunpack.c.h.b16 %v477
    %v494 = vunpack.c.h.b16 %v478
    %v495 = vpack.c.b16 %v494, %v493
    %v496 = vrot.slane %v495, 6
    %498 = vst [vmem:[%s485] sm:$0x44] %v496
    %499 = vst [vmem:[#allocation2] sm:$0x88] %v496
    %v500 = vrot.slane %v495, 7
    %502 = vst [vmem:[%s485] sm:$0x88] %v500
    %v503 = vrot.slane %v500, 4
    %505 = vst [vmem:[#allocation2 + $0x8] sm:$0x11] %v503
    %v506 = vld [vmem:[#allocation2] sm:$0xff]
    %v507 = vld [vmem:[%s485] sm:$0xff]
    %v508 = vld [vmem:[#allocation2] sm:$0xee]
    %v509 = vld [vmem:[#allocation2 + $0x8] sm:$0x11]
    %v511 = vunpack.c.l.b16 %v506
    %v512 = vunpack.c.h.b16 %v506
    %v513 = vpack.c.b16 %v511, %v511
    %v514 = vpack.c.b16 %v512, %v512
    %v518 = vunpack.c.l.b16 %v507
    %v519 = vunpack.c.h.b16 %v507
    %v520 = vpack.c.b16 %v518, %v518
    %v521 = vpack.c.b16 %v519, %v519
    %v526 = vunpack.c.l.b16 %v508
    %v527 = vunpack.c.h.b16 %v508
    %v528 = vunpack.c.l.b16 %v509
    %v529 = vunpack.c.h.b16 %v509
    %v530 = vpack.c.b16 %v528, %v526
    %v531 = vpack.c.b16 %v529, %v527
    %v532 = vrot.slane %v530, 1
    %v533 = vrot.slane %v531, 1
    %v536 = vld [vmem:[#allocation4] sm:$0xff]
    %v537 = vld [vmem:[#allocation4 + $0x8] sm:$0xff]
    %v538 = vld [vmem:[#allocation4 + $0x10] sm:$0xff]
    %v539 = vld [vmem:[#allocation4 + $0x18] sm:$0xff]
    %v540 = vld [vmem:[#allocation4 + $0x20] sm:$0xff]
    %v541 = vld [vmem:[#allocation4 + $0x28] sm:$0xff]
    %v542 = vld [vmem:[#allocation4 + $0x30] sm:$0xff]
    %v543 = vld [vmem:[#allocation4 + $0x38] sm:$0xff]
    %v544 = vld [vmem:[#allocation4 + $0x40] sm:$0xff]
    %v545 = vld [vmem:[#allocation4 + $0x48] sm:$0xff]
    %v546 = vld [vmem:[#allocation4 + $0x50] sm:$0xff]
    %v547 = vld [vmem:[#allocation4 + $0x58] sm:$0xff]
    %v548 = vld [vmem:[#allocation4 + $0x60] sm:$0xff]
    %v549 = vld [vmem:[#allocation4 + $0x68] sm:$0xff]
    %v550 = vld [vmem:[#allocation4 + $0x70] sm:$0xff]
    %v551 = vld [vmem:[#allocation4 + $0x78] sm:$0xff]
    %v552 = vld [vmem:[#allocation4 + $0x80] sm:$0xff]
    %v553 = vld [vmem:[#allocation4 + $0x88] sm:$0xff]
    %v554 = vld [vmem:[#allocation4 + $0x90] sm:$0xff]
    %v555 = vld [vmem:[#allocation4 + $0x98] sm:$0xff]
    %v556 = vld [vmem:[#allocation4 + $0xa0] sm:$0xff]
    %v557 = vld [vmem:[#allocation4 + $0xa8] sm:$0xff]
    %v558 = vld [vmem:[#allocation4 + $0xb0] sm:$0xff]
    %v559 = vld [vmem:[#allocation4 + $0xb8] sm:$0xff]
    %v560 = vld [vmem:[#allocation4 + $0xc0] sm:$0xff]
    %v561 = vld [vmem:[#allocation4 + $0xc8] sm:$0xff]
    %v562 = vld [vmem:[#allocation4 + $0xd0] sm:$0xff]
    %v563 = vld [vmem:[#allocation4 + $0xd8] sm:$0xff]
    %v564 = vld [vmem:[#allocation4 + $0xe0] sm:$0xff]
    %v565 = vld [vmem:[#allocation4 + $0xe8] sm:$0xff]
    %v566 = vld [vmem:[#allocation4 + $0xf0] sm:$0xff]
    %v567 = vld [vmem:[#allocation4 + $0xf8] sm:$0xff]
    %v568 = vld [vmem:[#allocation4 + $0x100] sm:$0xff]
    %v569 = vld [vmem:[#allocation4 + $0x108] sm:$0xff]
    %v570 = vld [vmem:[#allocation4 + $0x110] sm:$0xff]
    %v571 = vld [vmem:[#allocation4 + $0x118] sm:$0xff]
    %v572 = vld [vmem:[#allocation4 + $0x120] sm:$0xff]
    %v573 = vld [vmem:[#allocation4 + $0x128] sm:$0xff]
    %v574 = vld [vmem:[#allocation4 + $0x130] sm:$0xff]
    %v575 = vld [vmem:[#allocation4 + $0x138] sm:$0xff]
    %v576 = vld [vmem:[#allocation4 + $0x140] sm:$0xff]
    %v577 = vld [vmem:[#allocation4 + $0x148] sm:$0xff]
    %v578 = vld [vmem:[#allocation4 + $0x150] sm:$0xff]
    %v579 = vld [vmem:[#allocation4 + $0x158] sm:$0xff]
    %v580 = vld [vmem:[#allocation4 + $0x160] sm:$0xff]
    %v581 = vld [vmem:[#allocation4 + $0x168] sm:$0xff]
    %v582 = vld [vmem:[#allocation4 + $0x170] sm:$0xff]
    %v583 = vld [vmem:[#allocation4 + $0x178] sm:$0xff]
    %v584 = vld [vmem:[#allocation4 + $0x180] sm:$0xff]
    %v585 = vld [vmem:[#allocation4 + $0x188] sm:$0xff]
    %v586 = vld [vmem:[#allocation4 + $0x190] sm:$0xff]
    %v587 = vld [vmem:[#allocation4 + $0x198] sm:$0xff]
    %v588 = vld [vmem:[#allocation4 + $0x1a0] sm:$0xff]
    %v589 = vld [vmem:[#allocation4 + $0x1a8] sm:$0xff]
    %v590 = vld [vmem:[#allocation4 + $0x1b0] sm:$0xff]
    %v591 = vld [vmem:[#allocation4 + $0x1b8] sm:$0xff]
    %v592 = vld [vmem:[#allocation4 + $0x1c0] sm:$0xff]
    %v593 = vld [vmem:[#allocation4 + $0x1c8] sm:$0xff]
    %v594 = vld [vmem:[#allocation4 + $0x1d0] sm:$0xff]
    %v595 = vld [vmem:[#allocation4 + $0x1d8] sm:$0xff]
    %v596 = vld [vmem:[#allocation4 + $0x1e0] sm:$0xff]
    %v597 = vld [vmem:[#allocation4 + $0x1e8] sm:$0xff]
    %v598 = vld [vmem:[#allocation4 + $0x1f0] sm:$0xff]
    %v599 = vld [vmem:[#allocation4 + $0x1f8] sm:$0xff]
    %v600 = vld [vmem:[#allocation4 + $0x200] sm:$0xff]
    %v601 = vld [vmem:[#allocation4 + $0x208] sm:$0xff]
    %v602 = vld [vmem:[#allocation4 + $0x210] sm:$0xff]
    %v603 = vld [vmem:[#allocation4 + $0x218] sm:$0xff]
    %v604 = vld [vmem:[#allocation4 + $0x220] sm:$0xff]
    %v605 = vld [vmem:[#allocation4 + $0x228] sm:$0xff]
    %v606 = vld [vmem:[#allocation4 + $0x230] sm:$0xff]
    %v607 = vld [vmem:[#allocation4 + $0x238] sm:$0xff]
    %v608 = vld [vmem:[#allocation4 + $0x240] sm:$0xff]
    %v609 = vld [vmem:[#allocation4 + $0x248] sm:$0xff]
    %v610 = vld [vmem:[#allocation4 + $0x250] sm:$0xff]
    %v611 = vld [vmem:[#allocation4 + $0x258] sm:$0xff]
    %v612 = vld [vmem:[#allocation4 + $0x260] sm:$0xff]
    %v613 = vld [vmem:[#allocation4 + $0x268] sm:$0xff]
    %v614 = vld [vmem:[#allocation4 + $0x270] sm:$0xff]
    %v615 = vld [vmem:[#allocation4 + $0x278] sm:$0xff]
    %v616 = vld [vmem:[#allocation4 + $0x280] sm:$0xff]
    %v617 = vld [vmem:[#allocation4 + $0x288] sm:$0xff]
    %v618 = vld [vmem:[#allocation4 + $0x290] sm:$0xff]
    %v619 = vld [vmem:[#allocation4 + $0x298] sm:$0xff]
    %v620 = vld [vmem:[#allocation4 + $0x2a0] sm:$0xff]
    %v621 = vld [vmem:[#allocation4 + $0x2a8] sm:$0xff]
    %v622 = vld [vmem:[#allocation4 + $0x2b0] sm:$0xff]
    %v623 = vld [vmem:[#allocation4 + $0x2b8] sm:$0xff]
    %v624 = vld [vmem:[#allocation4 + $0x2c0] sm:$0xff]
    %v625 = vld [vmem:[#allocation4 + $0x2c8] sm:$0xff]
    %v626 = vld [vmem:[#allocation4 + $0x2d0] sm:$0xff]
    %v627 = vld [vmem:[#allocation4 + $0x2d8] sm:$0xff]
    %v628 = vld [vmem:[#allocation4 + $0x2e0] sm:$0xff]
    %v629 = vld [vmem:[#allocation4 + $0x2e8] sm:$0xff]
    %v630 = vld [vmem:[#allocation4 + $0x2f0] sm:$0xff]
    %v631 = vld [vmem:[#allocation4 + $0x2f8] sm:$0xff]
    %v632 = vld [vmem:[%s4] sm:$0x3]
    %v634 = vlaneseq
    %v635 = vshrl.u32 %v634, 7
    %v636 = vsub.s32 0, %v635
    %v637 = vrot.slane %v632, %v636
    %v638 = vlaneseq
    %v639 = vshrl.u32 %v638, 7
    %v640 = vsub.s32 1, %v639
    %v641 = vrot.slane %v632, %v640
    %v740 = vunpack.c.l.b16 %v536
    %v741 = vunpack.c.h.b16 %v536
    %v742 = vunpack.c.l.b16 %v537
    %v743 = vunpack.c.h.b16 %v537
    %v744 = vunpack.c.l.b16 %v538
    %v745 = vunpack.c.h.b16 %v538
    %v746 = vunpack.c.l.b16 %v539
    %v747 = vunpack.c.h.b16 %v539
    %v748 = vunpack.c.l.b16 %v540
    %v749 = vunpack.c.h.b16 %v540
    %v750 = vunpack.c.l.b16 %v541
    %v751 = vunpack.c.h.b16 %v541
    %v752 = vunpack.c.l.b16 %v542
    %v753 = vunpack.c.h.b16 %v542
    %v754 = vunpack.c.l.b16 %v543
    %v755 = vunpack.c.h.b16 %v543
    %v756 = vunpack.c.l.b16 %v544
    %v757 = vunpack.c.h.b16 %v544
    %v758 = vunpack.c.l.b16 %v545
    %v759 = vunpack.c.h.b16 %v545
    %v760 = vunpack.c.l.b16 %v546
    %v761 = vunpack.c.h.b16 %v546
    %v762 = vunpack.c.l.b16 %v547
    %v763 = vunpack.c.h.b16 %v547
    %v764 = vunpack.c.l.b16 %v548
    %v765 = vunpack.c.h.b16 %v548
    %v766 = vunpack.c.l.b16 %v549
    %v767 = vunpack.c.h.b16 %v549
    %v768 = vunpack.c.l.b16 %v550
    %v769 = vunpack.c.h.b16 %v550
    %v770 = vunpack.c.l.b16 %v551
    %v771 = vunpack.c.h.b16 %v551
    %v772 = vunpack.c.l.b16 %v552
    %v773 = vunpack.c.h.b16 %v552
    %v774 = vunpack.c.l.b16 %v553
    %v775 = vunpack.c.h.b16 %v553
    %v776 = vunpack.c.l.b16 %v554
    %v777 = vunpack.c.h.b16 %v554
    %v778 = vunpack.c.l.b16 %v555
    %v779 = vunpack.c.h.b16 %v555
    %v780 = vunpack.c.l.b16 %v556
    %v781 = vunpack.c.h.b16 %v556
    %v782 = vunpack.c.l.b16 %v557
    %v783 = vunpack.c.h.b16 %v557
    %v784 = vunpack.c.l.b16 %v558
    %v785 = vunpack.c.h.b16 %v558
    %v786 = vunpack.c.l.b16 %v559
    %v787 = vunpack.c.h.b16 %v559
    %v788 = vunpack.c.l.b16 %v560
    %v789 = vunpack.c.h.b16 %v560
    %v790 = vunpack.c.l.b16 %v561
    %v791 = vunpack.c.h.b16 %v561
    %v792 = vunpack.c.l.b16 %v562
    %v793 = vunpack.c.h.b16 %v562
    %v794 = vunpack.c.l.b16 %v563
    %v795 = vunpack.c.h.b16 %v563
    %v796 = vunpack.c.l.b16 %v564
    %v797 = vunpack.c.h.b16 %v564
    %v798 = vunpack.c.l.b16 %v565
    %v799 = vunpack.c.h.b16 %v565
    %v800 = vunpack.c.l.b16 %v566
    %v801 = vunpack.c.h.b16 %v566
    %v802 = vunpack.c.l.b16 %v567
    %v803 = vunpack.c.h.b16 %v567
    %v804 = vunpack.c.l.b16 %v568
    %v805 = vunpack.c.h.b16 %v568
    %v806 = vunpack.c.l.b16 %v569
    %v807 = vunpack.c.h.b16 %v569
    %v808 = vunpack.c.l.b16 %v570
    %v809 = vunpack.c.h.b16 %v570
    %v810 = vunpack.c.l.b16 %v571
    %v811 = vunpack.c.h.b16 %v571
    %v812 = vunpack.c.l.b16 %v572
    %v813 = vunpack.c.h.b16 %v572
    %v814 = vunpack.c.l.b16 %v573
    %v815 = vunpack.c.h.b16 %v573
    %v816 = vunpack.c.l.b16 %v574
    %v817 = vunpack.c.h.b16 %v574
    %v818 = vunpack.c.l.b16 %v575
    %v819 = vunpack.c.h.b16 %v575
    %v820 = vunpack.c.l.b16 %v576
    %v821 = vunpack.c.h.b16 %v576
    %v822 = vunpack.c.l.b16 %v577
    %v823 = vunpack.c.h.b16 %v577
    %v824 = vunpack.c.l.b16 %v578
    %v825 = vunpack.c.h.b16 %v578
    %v826 = vunpack.c.l.b16 %v579
    %v827 = vunpack.c.h.b16 %v579
    %v828 = vunpack.c.l.b16 %v580
    %v829 = vunpack.c.h.b16 %v580
    %v830 = vunpack.c.l.b16 %v581
    %v831 = vunpack.c.h.b16 %v581
    %v832 = vunpack.c.l.b16 %v582
    %v833 = vunpack.c.h.b16 %v582
    %v834 = vunpack.c.l.b16 %v583
    %v835 = vunpack.c.h.b16 %v583
    %v836 = vunpack.c.l.b16 %v584
    %v837 = vunpack.c.h.b16 %v584
    %v838 = vunpack.c.l.b16 %v585
    %v839 = vunpack.c.h.b16 %v585
    %v840 = vunpack.c.l.b16 %v586
    %v841 = vunpack.c.h.b16 %v586
    %v842 = vunpack.c.l.b16 %v587
    %v843 = vunpack.c.h.b16 %v587
    %v844 = vunpack.c.l.b16 %v588
    %v845 = vunpack.c.h.b16 %v588
    %v846 = vunpack.c.l.b16 %v589
    %v847 = vunpack.c.h.b16 %v589
    %v848 = vunpack.c.l.b16 %v590
    %v849 = vunpack.c.h.b16 %v590
    %v850 = vunpack.c.l.b16 %v591
    %v851 = vunpack.c.h.b16 %v591
    %v852 = vunpack.c.l.b16 %v592
    %v853 = vunpack.c.h.b16 %v592
    %v854 = vunpack.c.l.b16 %v593
    %v855 = vunpack.c.h.b16 %v593
    %v856 = vunpack.c.l.b16 %v594
    %v857 = vunpack.c.h.b16 %v594
    %v858 = vunpack.c.l.b16 %v595
    %v859 = vunpack.c.h.b16 %v595
    %v860 = vunpack.c.l.b16 %v596
    %v861 = vunpack.c.h.b16 %v596
    %v862 = vunpack.c.l.b16 %v597
    %v863 = vunpack.c.h.b16 %v597
    %v864 = vunpack.c.l.b16 %v598
    %v865 = vunpack.c.h.b16 %v598
    %v866 = vunpack.c.l.b16 %v599
    %v867 = vunpack.c.h.b16 %v599
    %v868 = vunpack.c.l.b16 %v600
    %v869 = vunpack.c.h.b16 %v600
    %v870 = vunpack.c.l.b16 %v601
    %v871 = vunpack.c.h.b16 %v601
    %v872 = vunpack.c.l.b16 %v602
    %v873 = vunpack.c.h.b16 %v602
    %v874 = vunpack.c.l.b16 %v603
    %v875 = vunpack.c.h.b16 %v603
    %v876 = vunpack.c.l.b16 %v604
    %v877 = vunpack.c.h.b16 %v604
    %v878 = vunpack.c.l.b16 %v605
    %v879 = vunpack.c.h.b16 %v605
    %v880 = vunpack.c.l.b16 %v606
    %v881 = vunpack.c.h.b16 %v606
    %v882 = vunpack.c.l.b16 %v607
    %v883 = vunpack.c.h.b16 %v607
    %v884 = vunpack.c.l.b16 %v608
    %v885 = vunpack.c.h.b16 %v608
    %v886 = vunpack.c.l.b16 %v609
    %v887 = vunpack.c.h.b16 %v609
    %v888 = vunpack.c.l.b16 %v610
    %v889 = vunpack.c.h.b16 %v610
    %v890 = vunpack.c.l.b16 %v611
    %v891 = vunpack.c.h.b16 %v611
    %v892 = vunpack.c.l.b16 %v612
    %v893 = vunpack.c.h.b16 %v612
    %v894 = vunpack.c.l.b16 %v613
    %v895 = vunpack.c.h.b16 %v613
    %v896 = vunpack.c.l.b16 %v614
    %v897 = vunpack.c.h.b16 %v614
    %v898 = vunpack.c.l.b16 %v615
    %v899 = vunpack.c.h.b16 %v615
    %v900 = vunpack.c.l.b16 %v616
    %v901 = vunpack.c.h.b16 %v616
    %v902 = vunpack.c.l.b16 %v617
    %v903 = vunpack.c.h.b16 %v617
    %v904 = vunpack.c.l.b16 %v618
    %v905 = vunpack.c.h.b16 %v618
    %v906 = vunpack.c.l.b16 %v619
    %v907 = vunpack.c.h.b16 %v619
    %v908 = vunpack.c.l.b16 %v620
    %v909 = vunpack.c.h.b16 %v620
    %v910 = vunpack.c.l.b16 %v621
    %v911 = vunpack.c.h.b16 %v621
    %v912 = vunpack.c.l.b16 %v622
    %v913 = vunpack.c.h.b16 %v622
    %v914 = vunpack.c.l.b16 %v623
    %v915 = vunpack.c.h.b16 %v623
    %v916 = vunpack.c.l.b16 %v624
    %v917 = vunpack.c.h.b16 %v624
    %v918 = vunpack.c.l.b16 %v625
    %v919 = vunpack.c.h.b16 %v625
    %v920 = vunpack.c.l.b16 %v626
    %v921 = vunpack.c.h.b16 %v626
    %v922 = vunpack.c.l.b16 %v627
    %v923 = vunpack.c.h.b16 %v627
    %v924 = vunpack.c.l.b16 %v628
    %v925 = vunpack.c.h.b16 %v628
    %v926 = vunpack.c.l.b16 %v629
    %v927 = vunpack.c.h.b16 %v629
    %v928 = vunpack.c.l.b16 %v630
    %v929 = vunpack.c.h.b16 %v630
    %v930 = vunpack.c.l.b16 %v631
    %v931 = vunpack.c.h.b16 %v631
    %v932 = vpack.c.b16 %v742, %v740
    %v933 = vpack.c.b16 %v743, %v741
    %v934 = vpack.c.b16 %v746, %v744
    %v935 = vpack.c.b16 %v747, %v745
    %v936 = vpack.c.b16 %v750, %v748
    %v937 = vpack.c.b16 %v751, %v749
    %v938 = vpack.c.b16 %v754, %v752
    %v939 = vpack.c.b16 %v755, %v753
    %v940 = vpack.c.b16 %v758, %v756
    %v941 = vpack.c.b16 %v759, %v757
    %v942 = vpack.c.b16 %v762, %v760
    %v943 = vpack.c.b16 %v763, %v761
    %v944 = vpack.c.b16 %v766, %v764
    %v945 = vpack.c.b16 %v767, %v765
    %v946 = vpack.c.b16 %v770, %v768
    %v947 = vpack.c.b16 %v771, %v769
    %v948 = vpack.c.b16 %v774, %v772
    %v949 = vpack.c.b16 %v775, %v773
    %v950 = vpack.c.b16 %v778, %v776
    %v951 = vpack.c.b16 %v779, %v777
    %v952 = vpack.c.b16 %v782, %v780
    %v953 = vpack.c.b16 %v783, %v781
    %v954 = vpack.c.b16 %v786, %v784
    %v955 = vpack.c.b16 %v787, %v785
    %v956 = vpack.c.b16 %v790, %v788
    %v957 = vpack.c.b16 %v791, %v789
    %v958 = vpack.c.b16 %v794, %v792
    %v959 = vpack.c.b16 %v795, %v793
    %v960 = vpack.c.b16 %v798, %v796
    %v961 = vpack.c.b16 %v799, %v797
    %v962 = vpack.c.b16 %v802, %v800
    %v963 = vpack.c.b16 %v803, %v801
    %v964 = vpack.c.b16 %v806, %v804
    %v965 = vpack.c.b16 %v807, %v805
    %v966 = vpack.c.b16 %v810, %v808
    %v967 = vpack.c.b16 %v811, %v809
    %v968 = vpack.c.b16 %v814, %v812
    %v969 = vpack.c.b16 %v815, %v813
    %v970 = vpack.c.b16 %v818, %v816
    %v971 = vpack.c.b16 %v819, %v817
    %v972 = vpack.c.b16 %v822, %v820
    %v973 = vpack.c.b16 %v823, %v821
    %v974 = vpack.c.b16 %v826, %v824
    %v975 = vpack.c.b16 %v827, %v825
    %v976 = vpack.c.b16 %v830, %v828
    %v977 = vpack.c.b16 %v831, %v829
    %v978 = vpack.c.b16 %v834, %v832
    %v979 = vpack.c.b16 %v835, %v833
    %v980 = vpack.c.b16 %v838, %v836
    %v981 = vpack.c.b16 %v839, %v837
    %v982 = vpack.c.b16 %v842, %v840
    %v983 = vpack.c.b16 %v843, %v841
    %v984 = vpack.c.b16 %v846, %v844
    %v985 = vpack.c.b16 %v847, %v845
    %v986 = vpack.c.b16 %v850, %v848
    %v987 = vpack.c.b16 %v851, %v849
    %v988 = vpack.c.b16 %v854, %v852
    %v989 = vpack.c.b16 %v855, %v853
    %v990 = vpack.c.b16 %v858, %v856
    %v991 = vpack.c.b16 %v859, %v857
    %v992 = vpack.c.b16 %v862, %v860
    %v993 = vpack.c.b16 %v863, %v861
    %v994 = vpack.c.b16 %v866, %v864
    %v995 = vpack.c.b16 %v867, %v865
    %v996 = vpack.c.b16 %v870, %v868
    %v997 = vpack.c.b16 %v871, %v869
    %v998 = vpack.c.b16 %v874, %v872
    %v999 = vpack.c.b16 %v875, %v873
    %v1000 = vpack.c.b16 %v878, %v876
    %v1001 = vpack.c.b16 %v879, %v877
    %v1002 = vpack.c.b16 %v882, %v880
    %v1003 = vpack.c.b16 %v883, %v881
    %v1004 = vpack.c.b16 %v886, %v884
    %v1005 = vpack.c.b16 %v887, %v885
    %v1006 = vpack.c.b16 %v890, %v888
    %v1007 = vpack.c.b16 %v891, %v889
    %v1008 = vpack.c.b16 %v894, %v892
    %v1009 = vpack.c.b16 %v895, %v893
    %v1010 = vpack.c.b16 %v898, %v896
    %v1011 = vpack.c.b16 %v899, %v897
    %v1012 = vpack.c.b16 %v902, %v900
    %v1013 = vpack.c.b16 %v903, %v901
    %v1014 = vpack.c.b16 %v906, %v904
    %v1015 = vpack.c.b16 %v907, %v905
    %v1016 = vpack.c.b16 %v910, %v908
    %v1017 = vpack.c.b16 %v911, %v909
    %v1018 = vpack.c.b16 %v914, %v912
    %v1019 = vpack.c.b16 %v915, %v913
    %v1020 = vpack.c.b16 %v918, %v916
    %v1021 = vpack.c.b16 %v919, %v917
    %v1022 = vpack.c.b16 %v922, %v920
    %v1023 = vpack.c.b16 %v923, %v921
    %v1024 = vpack.c.b16 %v926, %v924
    %v1025 = vpack.c.b16 %v927, %v925
    %v1026 = vpack.c.b16 %v930, %v928
    %v1027 = vpack.c.b16 %v931, %v929
    %1124 = vmatprep.subr.bf16.mxu0 %v933
    %1125 = vmatpush1.bf16.msra.mxu0 %v932
    %1126 = vmatprep.subr.bf16.mxu0 %v935
    %1127 = vmatpush1.bf16.msra.mxu0 %v934
    %1128 = vmatprep.subr.bf16.mxu0 %v937
    %1129 = vmatpush1.bf16.msra.mxu0 %v936
    %1130 = vmatprep.subr.bf16.mxu0 %v939
    %1131 = vmatpush1.bf16.msra.mxu0 %v938
    %1132 = vmatprep.subr.bf16.mxu0 %v941
    %1133 = vmatpush1.bf16.msra.mxu0 %v940
    %1134 = vmatprep.subr.bf16.mxu0 %v943
    %1135 = vmatpush1.bf16.msra.mxu0 %v942
    %1136 = vmatprep.subr.bf16.mxu0 %v945
    %1137 = vmatpush1.bf16.msra.mxu0 %v944
    %1138 = vmatprep.subr.bf16.mxu0 %v947
    %1139 = vmatpush1.bf16.msra.mxu0 %v946
    %1140 = vmatprep.subr.bf16.mxu0 %v949
    %1141 = vmatpush1.bf16.msra.mxu0 %v948
    %1142 = vmatprep.subr.bf16.mxu0 %v951
    %1143 = vmatpush1.bf16.msra.mxu0 %v950
    %1144 = vmatprep.subr.bf16.mxu0 %v953
    %1145 = vmatpush1.bf16.msra.mxu0 %v952
    %1146 = vmatprep.subr.bf16.mxu0 %v955
    %1147 = vmatpush1.bf16.msra.mxu0 %v954
    %1148 = vmatprep.subr.bf16.mxu0 %v957
    %1149 = vmatpush1.bf16.msra.mxu0 %v956
    %1150 = vmatprep.subr.bf16.mxu0 %v959
    %1151 = vmatpush1.bf16.msra.mxu0 %v958
    %1152 = vmatprep.subr.bf16.mxu0 %v961
    %1153 = vmatpush1.bf16.msra.mxu0 %v960
    %1154 = vmatprep.subr.bf16.mxu0 %v963
    %1155 = vmatpush1.bf16.msra.mxu0 %v962
    %1156 = vmatprep.mubr.bf16.mxu0 %v514
    %1157 = vmatmul.mubr.bf16.gmra.mrb[0].mxu0 %v513
    %v1158 = vpop.f32.mrb[0].mxu0
    %v1159 = vadd.f32 %v637, %v1158
    %v1160 = vpop.f32.mrb[0].mxu0
    %v1161 = vadd.f32 %v641, %v1160
    %v1162 = vpop.f32.mrb[0].mxu0
    %v1163 = vpop.f32.mrb[0].mxu0
    %1164 = vdwg.mxu0
    %1165 = vmatprep.subr.bf16.mxu0 %v965
    %1166 = vmatpush1.bf16.msra.mxu0 %v964
    %1167 = vmatprep.subr.bf16.mxu0 %v967
    %1168 = vmatpush1.bf16.msra.mxu0 %v966
    %1169 = vmatprep.subr.bf16.mxu0 %v969
    %1170 = vmatpush1.bf16.msra.mxu0 %v968
    %1171 = vmatprep.subr.bf16.mxu0 %v971
    %1172 = vmatpush1.bf16.msra.mxu0 %v970
    %1173 = vmatprep.subr.bf16.mxu0 %v973
    %1174 = vmatpush1.bf16.msra.mxu0 %v972
    %1175 = vmatprep.subr.bf16.mxu0 %v975
    %1176 = vmatpush1.bf16.msra.mxu0 %v974
    %1177 = vmatprep.subr.bf16.mxu0 %v977
    %1178 = vmatpush1.bf16.msra.mxu0 %v976
    %1179 = vmatprep.subr.bf16.mxu0 %v979
    %1180 = vmatpush1.bf16.msra.mxu0 %v978
    %1181 = vmatprep.subr.bf16.mxu0 %v981
    %1182 = vmatpush1.bf16.msra.mxu0 %v980
    %1183 = vmatprep.subr.bf16.mxu0 %v983
    %1184 = vmatpush1.bf16.msra.mxu0 %v982
    %1185 = vmatprep.subr.bf16.mxu0 %v985
    %1186 = vmatpush1.bf16.msra.mxu0 %v984
    %1187 = vmatprep.subr.bf16.mxu0 %v987
    %1188 = vmatpush1.bf16.msra.mxu0 %v986
    %1189 = vmatprep.subr.bf16.mxu0 %v989
    %1190 = vmatpush1.bf16.msra.mxu0 %v988
    %1191 = vmatprep.subr.bf16.mxu0 %v991
    %1192 = vmatpush1.bf16.msra.mxu0 %v990
    %1193 = vmatprep.subr.bf16.mxu0 %v993
    %1194 = vmatpush1.bf16.msra.mxu0 %v992
    %1195 = vmatprep.subr.bf16.mxu0 %v995
    %1196 = vmatpush1.bf16.msra.mxu0 %v994
    %1197 = vmatprep.mubr.bf16.mxu0 %v521
    %1198 = vmatmul.mubr.bf16.gmra.mrb[0].mxu0 %v520
    %v1199 = vpop.f32.mrb[0].mxu0
    %v1200 = vadd.f32 %v1159, %v1199
    %v1201 = vpop.f32.mrb[0].mxu0
    %v1202 = vadd.f32 %v1161, %v1201
    %v1203 = vpop.f32.mrb[0].mxu0
    %v1204 = vpop.f32.mrb[0].mxu0
    %1205 = vdwg.mxu0
    %1206 = vmatprep.subr.bf16.mxu0 %v997
    %1207 = vmatpush1.bf16.msra.mxu0 %v996
    %1208 = vmatprep.subr.bf16.mxu0 %v999
    %1209 = vmatpush1.bf16.msra.mxu0 %v998
    %1210 = vmatprep.subr.bf16.mxu0 %v1001
    %1211 = vmatpush1.bf16.msra.mxu0 %v1000
    %1212 = vmatprep.subr.bf16.mxu0 %v1003
    %1213 = vmatpush1.bf16.msra.mxu0 %v1002
    %1214 = vmatprep.subr.bf16.mxu0 %v1005
    %1215 = vmatpush1.bf16.msra.mxu0 %v1004
    %1216 = vmatprep.subr.bf16.mxu0 %v1007
    %1217 = vmatpush1.bf16.msra.mxu0 %v1006
    %1218 = vmatprep.subr.bf16.mxu0 %v1009
    %1219 = vmatpush1.bf16.msra.mxu0 %v1008
    %1220 = vmatprep.subr.bf16.mxu0 %v1011
    %1221 = vmatpush1.bf16.msra.mxu0 %v1010
    %1222 = vmatprep.subr.bf16.mxu0 %v1013
    %1223 = vmatpush1.bf16.msra.mxu0 %v1012
    %1224 = vmatprep.subr.bf16.mxu0 %v1015
    %1225 = vmatpush1.bf16.msra.mxu0 %v1014
    %1226 = vmatprep.subr.bf16.mxu0 %v1017
    %1227 = vmatpush1.bf16.msra.mxu0 %v1016
    %1228 = vmatprep.subr.bf16.mxu0 %v1019
    %1229 = vmatpush1.bf16.msra.mxu0 %v1018
    %1230 = vmatprep.subr.bf16.mxu0 %v1021
    %1231 = vmatpush1.bf16.msra.mxu0 %v1020
    %1232 = vmatprep.subr.bf16.mxu0 %v1023
    %1233 = vmatpush1.bf16.msra.mxu0 %v1022
    %1234 = vmatprep.subr.bf16.mxu0 %v1025
    %1235 = vmatpush1.bf16.msra.mxu0 %v1024
    %1236 = vmatprep.subr.bf16.mxu0 %v1027
    %1237 = vmatpush1.bf16.msra.mxu0 %v1026
    %1238 = vmatprep.mubr.bf16.mxu0 %v533
    %1239 = vmatmul.mubr.bf16.gmra.mrb[0].mxu0 %v532
    %v1240 = vpop.f32.mrb[0].mxu0
    %v1241 = vadd.f32 %v1200, %v1240
    %v1242 = vpop.f32.mrb[0].mxu0
    %v1243 = vadd.f32 %v1202, %v1242
    %v1244 = vpop.f32.mrb[0].mxu0
    %v1245 = vpop.f32.mrb[0].mxu0
    %1246 = vdwg.mxu0
    %v1247 = vmax.f32 %v1241, 0.0
    %v1248 = vmax.f32 %v1243, 0.0
    %v1249 = vpack.c.bf16 %v1247, %v1247
    %v1250 = vpack.c.bf16 %v1248, %v1248
    %v1253 = vunpack.c.l.b16 %v1249
    %v1254 = vunpack.c.l.b16 %v1250
    %v1255 = vpack.c.b16 %v1254, %v1253
    %s1257 = scalar_lea.vmem [#allocation3], 8
    %1258 = vst [vmem:[%s1257] sm:$0x11] %v1255
    %1259 = vst [vmem:[#allocation3] sm:$0x22] %v1255
    %v1260 = vrot.slane %v1255, 5
    %v1261 = vrot.slane %v1260, 4
    %1263 = vst [vmem:[%s1257] sm:$0x22] %v1261
    %1264 = vst [vmem:[#allocation3] sm:$0x44] %v1261
    %v1265 = vld [vmem:[#allocation3] sm:$0x33]
    %v1266 = vld [vmem:[%s1257] sm:$0x33]
    %v1267 = vld [vmem:[#allocation3] sm:$0x66]
    %v1269 = vunpack.c.l.b16 %v1265
    %v1270 = vunpack.c.h.b16 %v1265
    %v1271 = vpack.c.b16 %v1269, %v1269
    %v1272 = vpack.c.b16 %v1270, %v1270
    %v1276 = vunpack.c.l.b16 %v1266
    %v1277 = vunpack.c.h.b16 %v1266
    %v1278 = vpack.c.b16 %v1276, %v1276
    %v1279 = vpack.c.b16 %v1277, %v1277
    %v1283 = vunpack.c.l.b16 %v1267
    %v1284 = vunpack.c.h.b16 %v1267
    %v1285 = vpack.c.b16 %v1283, %v1283
    %v1286 = vpack.c.b16 %v1284, %v1284
    %v1287 = vrot.slane %v1285, 1
    %v1288 = vrot.slane %v1286, 1
    %v1291 = vld [vmem:[#allocation6] sm:$0xf]
    %v1292 = vld [vmem:[#allocation6 + $0x4] sm:$0xf]
    %v1293 = vld [vmem:[#allocation6 + $0x8] sm:$0xf]
    %v1294 = vld [vmem:[#allocation6 + $0xc] sm:$0xf]
    %v1295 = vld [vmem:[#allocation6 + $0x10] sm:$0xf]
    %v1296 = vld [vmem:[#allocation6 + $0x14] sm:$0xf]
    %v1297 = vld [vmem:[#allocation6 + $0x18] sm:$0xf]
    %v1298 = vld [vmem:[#allocation6 + $0x1c] sm:$0xf]
    %v1299 = vld [vmem:[#allocation6 + $0x20] sm:$0xf]
    %v1300 = vld [vmem:[#allocation6 + $0x24] sm:$0xf]
    %v1301 = vld [vmem:[#allocation6 + $0x28] sm:$0xf]
    %v1302 = vld [vmem:[#allocation6 + $0x2c] sm:$0xf]
    %v1303 = vld [vmem:[#allocation6 + $0x30] sm:$0xf]
    %v1304 = vld [vmem:[#allocation6 + $0x34] sm:$0xf]
    %v1305 = vld [vmem:[#allocation6 + $0x38] sm:$0xf]
    %v1306 = vld [vmem:[#allocation6 + $0x3c] sm:$0xf]
    %v1307 = vld [vmem:[#allocation6 + $0x40] sm:$0xf]
    %v1308 = vld [vmem:[#allocation6 + $0x44] sm:$0xf]
    %v1309 = vld [vmem:[#allocation6 + $0x48] sm:$0xf]
    %v1310 = vld [vmem:[#allocation6 + $0x4c] sm:$0xf]
    %v1311 = vld [vmem:[#allocation6 + $0x50] sm:$0xf]
    %v1312 = vld [vmem:[#allocation6 + $0x54] sm:$0xf]
    %v1313 = vld [vmem:[#allocation6 + $0x58] sm:$0xf]
    %v1314 = vld [vmem:[#allocation6 + $0x5c] sm:$0xf]
    %v1315 = vld [vmem:[#allocation6 + $0x60] sm:$0xf]
    %v1316 = vld [vmem:[#allocation6 + $0x64] sm:$0xf]
    %v1317 = vld [vmem:[#allocation6 + $0x68] sm:$0xf]
    %v1318 = vld [vmem:[#allocation6 + $0x6c] sm:$0xf]
    %v1319 = vld [vmem:[#allocation6 + $0x70] sm:$0xf]
    %v1320 = vld [vmem:[#allocation6 + $0x74] sm:$0xf]
    %v1321 = vld [vmem:[#allocation6 + $0x78] sm:$0xf]
    %v1322 = vld [vmem:[#allocation6 + $0x7c] sm:$0xf]
    %v1323 = vld [vmem:[#allocation6 + $0x80] sm:$0xf]
    %v1324 = vld [vmem:[#allocation6 + $0x84] sm:$0xf]
    %v1325 = vld [vmem:[#allocation6 + $0x88] sm:$0xf]
    %v1326 = vld [vmem:[#allocation6 + $0x8c] sm:$0xf]
    %v1327 = vld [vmem:[#allocation6 + $0x90] sm:$0xf]
    %v1328 = vld [vmem:[#allocation6 + $0x94] sm:$0xf]
    %v1329 = vld [vmem:[#allocation6 + $0x98] sm:$0xf]
    %v1330 = vld [vmem:[#allocation6 + $0x9c] sm:$0xf]
    %v1331 = vld [vmem:[#allocation6 + $0xa0] sm:$0xf]
    %v1332 = vld [vmem:[#allocation6 + $0xa4] sm:$0xf]
    %v1333 = vld [vmem:[#allocation6 + $0xa8] sm:$0xf]
    %v1334 = vld [vmem:[#allocation6 + $0xac] sm:$0xf]
    %v1335 = vld [vmem:[#allocation6 + $0xb0] sm:$0xf]
    %v1336 = vld [vmem:[#allocation6 + $0xb4] sm:$0xf]
    %v1337 = vld [vmem:[#allocation6 + $0xb8] sm:$0xf]
    %v1338 = vld [vmem:[#allocation6 + $0xbc] sm:$0xf]
    %v1339 = vld [vmem:[#allocation6 + $0xc0] sm:$0xf]
    %v1340 = vld [vmem:[#allocation6 + $0xc4] sm:$0xf]
    %v1341 = vld [vmem:[#allocation6 + $0xc8] sm:$0xf]
    %v1342 = vld [vmem:[#allocation6 + $0xcc] sm:$0xf]
    %v1343 = vld [vmem:[#allocation6 + $0xd0] sm:$0xf]
    %v1344 = vld [vmem:[#allocation6 + $0xd4] sm:$0xf]
    %v1345 = vld [vmem:[#allocation6 + $0xd8] sm:$0xf]
    %v1346 = vld [vmem:[#allocation6 + $0xdc] sm:$0xf]
    %v1347 = vld [vmem:[#allocation6 + $0xe0] sm:$0xf]
    %v1348 = vld [vmem:[#allocation6 + $0xe4] sm:$0xf]
    %v1349 = vld [vmem:[#allocation6 + $0xe8] sm:$0xf]
    %v1350 = vld [vmem:[#allocation6 + $0xec] sm:$0xf]
    %v1351 = vld [vmem:[#allocation6 + $0xf0] sm:$0xf]
    %v1352 = vld [vmem:[#allocation6 + $0xf4] sm:$0xf]
    %v1353 = vld [vmem:[#allocation6 + $0xf8] sm:$0xf]
    %v1354 = vld [vmem:[#allocation6 + $0xfc] sm:$0xf]
    %v1355 = vld [vmem:[#allocation6 + $0x100] sm:$0xf]
    %v1356 = vld [vmem:[#allocation6 + $0x104] sm:$0xf]
    %v1357 = vld [vmem:[#allocation6 + $0x108] sm:$0xf]
    %v1358 = vld [vmem:[#allocation6 + $0x10c] sm:$0xf]
    %v1359 = vld [vmem:[#allocation6 + $0x110] sm:$0xf]
    %v1360 = vld [vmem:[#allocation6 + $0x114] sm:$0xf]
    %v1361 = vld [vmem:[#allocation6 + $0x118] sm:$0xf]
    %v1362 = vld [vmem:[#allocation6 + $0x11c] sm:$0xf]
    %v1363 = vld [vmem:[#allocation6 + $0x120] sm:$0xf]
    %v1364 = vld [vmem:[#allocation6 + $0x124] sm:$0xf]
    %v1365 = vld [vmem:[#allocation6 + $0x128] sm:$0xf]
    %v1366 = vld [vmem:[#allocation6 + $0x12c] sm:$0xf]
    %v1367 = vld [vmem:[#allocation6 + $0x130] sm:$0xf]
    %v1368 = vld [vmem:[#allocation6 + $0x134] sm:$0xf]
    %v1369 = vld [vmem:[#allocation6 + $0x138] sm:$0xf]
    %v1370 = vld [vmem:[#allocation6 + $0x13c] sm:$0xf]
    %v1371 = vld [vmem:[#allocation6 + $0x140] sm:$0xf]
    %v1372 = vld [vmem:[#allocation6 + $0x144] sm:$0xf]
    %v1373 = vld [vmem:[#allocation6 + $0x148] sm:$0xf]
    %v1374 = vld [vmem:[#allocation6 + $0x14c] sm:$0xf]
    %v1375 = vld [vmem:[#allocation6 + $0x150] sm:$0xf]
    %v1376 = vld [vmem:[#allocation6 + $0x154] sm:$0xf]
    %v1377 = vld [vmem:[#allocation6 + $0x158] sm:$0xf]
    %v1378 = vld [vmem:[#allocation6 + $0x15c] sm:$0xf]
    %v1379 = vld [vmem:[#allocation6 + $0x160] sm:$0xf]
    %v1380 = vld [vmem:[#allocation6 + $0x164] sm:$0xf]
    %v1381 = vld [vmem:[#allocation6 + $0x168] sm:$0xf]
    %v1382 = vld [vmem:[#allocation6 + $0x16c] sm:$0xf]
    %v1383 = vld [vmem:[#allocation6 + $0x170] sm:$0xf]
    %v1384 = vld [vmem:[#allocation6 + $0x174] sm:$0xf]
    %v1385 = vld [vmem:[#allocation6 + $0x178] sm:$0xf]
    %v1386 = vld [vmem:[#allocation6 + $0x17c] sm:$0xf]
    %v1387 = vld [vmem:[%s6] sm:$0x1]
    %v1389 = vlaneseq
    %v1390 = vshrl.u32 %v1389, 7
    %v1391 = vsub.s32 0, %v1390
    %v1392 = vrot.slane %v1387, %v1391
    %v1490 = vunpack.c.l.b16 %v1291
    %v1491 = vunpack.c.l.b16 %v1292
    %v1492 = vunpack.c.l.b16 %v1293
    %v1493 = vunpack.c.l.b16 %v1294
    %v1494 = vunpack.c.l.b16 %v1295
    %v1495 = vunpack.c.l.b16 %v1296
    %v1496 = vunpack.c.l.b16 %v1297
    %v1497 = vunpack.c.l.b16 %v1298
    %v1498 = vunpack.c.l.b16 %v1299
    %v1499 = vunpack.c.l.b16 %v1300
    %v1500 = vunpack.c.l.b16 %v1301
    %v1501 = vunpack.c.l.b16 %v1302
    %v1502 = vunpack.c.l.b16 %v1303
    %v1503 = vunpack.c.l.b16 %v1304
    %v1504 = vunpack.c.l.b16 %v1305
    %v1505 = vunpack.c.l.b16 %v1306
    %v1506 = vunpack.c.l.b16 %v1307
    %v1507 = vunpack.c.l.b16 %v1308
    %v1508 = vunpack.c.l.b16 %v1309
    %v1509 = vunpack.c.l.b16 %v1310
    %v1510 = vunpack.c.l.b16 %v1311
    %v1511 = vunpack.c.l.b16 %v1312
    %v1512 = vunpack.c.l.b16 %v1313
    %v1513 = vunpack.c.l.b16 %v1314
    %v1514 = vunpack.c.l.b16 %v1315
    %v1515 = vunpack.c.l.b16 %v1316
    %v1516 = vunpack.c.l.b16 %v1317
    %v1517 = vunpack.c.l.b16 %v1318
    %v1518 = vunpack.c.l.b16 %v1319
    %v1519 = vunpack.c.l.b16 %v1320
    %v1520 = vunpack.c.l.b16 %v1321
    %v1521 = vunpack.c.l.b16 %v1322
    %v1522 = vunpack.c.l.b16 %v1323
    %v1523 = vunpack.c.l.b16 %v1324
    %v1524 = vunpack.c.l.b16 %v1325
    %v1525 = vunpack.c.l.b16 %v1326
    %v1526 = vunpack.c.l.b16 %v1327
    %v1527 = vunpack.c.l.b16 %v1328
    %v1528 = vunpack.c.l.b16 %v1329
    %v1529 = vunpack.c.l.b16 %v1330
    %v1530 = vunpack.c.l.b16 %v1331
    %v1531 = vunpack.c.l.b16 %v1332
    %v1532 = vunpack.c.l.b16 %v1333
    %v1533 = vunpack.c.l.b16 %v1334
    %v1534 = vunpack.c.l.b16 %v1335
    %v1535 = vunpack.c.l.b16 %v1336
    %v1536 = vunpack.c.l.b16 %v1337
    %v1537 = vunpack.c.l.b16 %v1338
    %v1538 = vunpack.c.l.b16 %v1339
    %v1539 = vunpack.c.l.b16 %v1340
    %v1540 = vunpack.c.l.b16 %v1341
    %v1541 = vunpack.c.l.b16 %v1342
    %v1542 = vunpack.c.l.b16 %v1343
    %v1543 = vunpack.c.l.b16 %v1344
    %v1544 = vunpack.c.l.b16 %v1345
    %v1545 = vunpack.c.l.b16 %v1346
    %v1546 = vunpack.c.l.b16 %v1347
    %v1547 = vunpack.c.l.b16 %v1348
    %v1548 = vunpack.c.l.b16 %v1349
    %v1549 = vunpack.c.l.b16 %v1350
    %v1550 = vunpack.c.l.b16 %v1351
    %v1551 = vunpack.c.l.b16 %v1352
    %v1552 = vunpack.c.l.b16 %v1353
    %v1553 = vunpack.c.l.b16 %v1354
    %v1554 = vunpack.c.l.b16 %v1355
    %v1555 = vunpack.c.l.b16 %v1356
    %v1556 = vunpack.c.l.b16 %v1357
    %v1557 = vunpack.c.l.b16 %v1358
    %v1558 = vunpack.c.l.b16 %v1359
    %v1559 = vunpack.c.l.b16 %v1360
    %v1560 = vunpack.c.l.b16 %v1361
    %v1561 = vunpack.c.l.b16 %v1362
    %v1562 = vunpack.c.l.b16 %v1363
    %v1563 = vunpack.c.l.b16 %v1364
    %v1564 = vunpack.c.l.b16 %v1365
    %v1565 = vunpack.c.l.b16 %v1366
    %v1566 = vunpack.c.l.b16 %v1367
    %v1567 = vunpack.c.l.b16 %v1368
    %v1568 = vunpack.c.l.b16 %v1369
    %v1569 = vunpack.c.l.b16 %v1370
    %v1570 = vunpack.c.l.b16 %v1371
    %v1571 = vunpack.c.l.b16 %v1372
    %v1572 = vunpack.c.l.b16 %v1373
    %v1573 = vunpack.c.l.b16 %v1374
    %v1574 = vunpack.c.l.b16 %v1375
    %v1575 = vunpack.c.l.b16 %v1376
    %v1576 = vunpack.c.l.b16 %v1377
    %v1577 = vunpack.c.l.b16 %v1378
    %v1578 = vunpack.c.l.b16 %v1379
    %v1579 = vunpack.c.l.b16 %v1380
    %v1580 = vunpack.c.l.b16 %v1381
    %v1581 = vunpack.c.l.b16 %v1382
    %v1582 = vunpack.c.l.b16 %v1383
    %v1583 = vunpack.c.l.b16 %v1384
    %v1584 = vunpack.c.l.b16 %v1385
    %v1585 = vunpack.c.l.b16 %v1386
    %v1586 = vpack.c.b16 %v1491, %v1490
    %v1587 = vpack.c.b16 %v1493, %v1492
    %v1588 = vpack.c.b16 %v1495, %v1494
    %v1589 = vpack.c.b16 %v1497, %v1496
    %v1590 = vpack.c.b16 %v1499, %v1498
    %v1591 = vpack.c.b16 %v1501, %v1500
    %v1592 = vpack.c.b16 %v1503, %v1502
    %v1593 = vpack.c.b16 %v1505, %v1504
    %v1594 = vpack.c.b16 %v1507, %v1506
    %v1595 = vpack.c.b16 %v1509, %v1508
    %v1596 = vpack.c.b16 %v1511, %v1510
    %v1597 = vpack.c.b16 %v1513, %v1512
    %v1598 = vpack.c.b16 %v1515, %v1514
    %v1599 = vpack.c.b16 %v1517, %v1516
    %v1600 = vpack.c.b16 %v1519, %v1518
    %v1601 = vpack.c.b16 %v1521, %v1520
    %v1602 = vpack.c.b16 %v1523, %v1522
    %v1603 = vpack.c.b16 %v1525, %v1524
    %v1604 = vpack.c.b16 %v1527, %v1526
    %v1605 = vpack.c.b16 %v1529, %v1528
    %v1606 = vpack.c.b16 %v1531, %v1530
    %v1607 = vpack.c.b16 %v1533, %v1532
    %v1608 = vpack.c.b16 %v1535, %v1534
    %v1609 = vpack.c.b16 %v1537, %v1536
    %v1610 = vpack.c.b16 %v1539, %v1538
    %v1611 = vpack.c.b16 %v1541, %v1540
    %v1612 = vpack.c.b16 %v1543, %v1542
    %v1613 = vpack.c.b16 %v1545, %v1544
    %v1614 = vpack.c.b16 %v1547, %v1546
    %v1615 = vpack.c.b16 %v1549, %v1548
    %v1616 = vpack.c.b16 %v1551, %v1550
    %v1617 = vpack.c.b16 %v1553, %v1552
    %v1618 = vpack.c.b16 %v1555, %v1554
    %v1619 = vpack.c.b16 %v1557, %v1556
    %v1620 = vpack.c.b16 %v1559, %v1558
    %v1621 = vpack.c.b16 %v1561, %v1560
    %v1622 = vpack.c.b16 %v1563, %v1562
    %v1623 = vpack.c.b16 %v1565, %v1564
    %v1624 = vpack.c.b16 %v1567, %v1566
    %v1625 = vpack.c.b16 %v1569, %v1568
    %v1626 = vpack.c.b16 %v1571, %v1570
    %v1627 = vpack.c.b16 %v1573, %v1572
    %v1628 = vpack.c.b16 %v1575, %v1574
    %v1629 = vpack.c.b16 %v1577, %v1576
    %v1630 = vpack.c.b16 %v1579, %v1578
    %v1631 = vpack.c.b16 %v1581, %v1580
    %v1632 = vpack.c.b16 %v1583, %v1582
    %v1633 = vpack.c.b16 %v1585, %v1584
    %1682 = vmatprep.subr.bf16.mxu0 0
    %1683 = vmatpush1.bf16.msra.mxu0 %v1586
    %1684 = vmatprep.subr.bf16.mxu0 0
    %1685 = vmatpush1.bf16.msra.mxu0 %v1587
    %1686 = vmatprep.subr.bf16.mxu0 0
    %1687 = vmatpush1.bf16.msra.mxu0 %v1588
    %1688 = vmatprep.subr.bf16.mxu0 0
    %1689 = vmatpush1.bf16.msra.mxu0 %v1589
    %1690 = vmatprep.subr.bf16.mxu0 0
    %1691 = vmatpush1.bf16.msra.mxu0 %v1590
    %1692 = vmatprep.subr.bf16.mxu0 0
    %1693 = vmatpush1.bf16.msra.mxu0 %v1591
    %1694 = vmatprep.subr.bf16.mxu0 0
    %1695 = vmatpush1.bf16.msra.mxu0 %v1592
    %1696 = vmatprep.subr.bf16.mxu0 0
    %1697 = vmatpush1.bf16.msra.mxu0 %v1593
    %1698 = vmatprep.subr.bf16.mxu0 0
    %1699 = vmatpush1.bf16.msra.mxu0 %v1594
    %1700 = vmatprep.subr.bf16.mxu0 0
    %1701 = vmatpush1.bf16.msra.mxu0 %v1595
    %1702 = vmatprep.subr.bf16.mxu0 0
    %1703 = vmatpush1.bf16.msra.mxu0 %v1596
    %1704 = vmatprep.subr.bf16.mxu0 0
    %1705 = vmatpush1.bf16.msra.mxu0 %v1597
    %1706 = vmatprep.subr.bf16.mxu0 0
    %1707 = vmatpush1.bf16.msra.mxu0 %v1598
    %1708 = vmatprep.subr.bf16.mxu0 0
    %1709 = vmatpush1.bf16.msra.mxu0 %v1599
    %1710 = vmatprep.subr.bf16.mxu0 0
    %1711 = vmatpush1.bf16.msra.mxu0 %v1600
    %1712 = vmatprep.subr.bf16.mxu0 0
    %1713 = vmatpush1.bf16.msra.mxu0 %v1601
    %1714 = vmatprep.mubr.bf16.mxu0 %v1272
    %1715 = vmatmul.mubr.bf16.gmra.mrb[0].mxu0 %v1271
    %v1716 = vpop.f32.mrb[0].mxu0
    %v1717 = vadd.f32 %v1392, %v1716
    %v1718 = vpop.f32.mrb[0].mxu0
    %v1719 = vpop.f32.mrb[0].mxu0
    %v1720 = vpop.f32.mrb[0].mxu0
    %1721 = vdwg.mxu0
    %1722 = vmatprep.subr.bf16.mxu0 0
    %1723 = vmatpush1.bf16.msra.mxu0 %v1602
    %1724 = vmatprep.subr.bf16.mxu0 0
    %1725 = vmatpush1.bf16.msra.mxu0 %v1603
    %1726 = vmatprep.subr.bf16.mxu0 0
    %1727 = vmatpush1.bf16.msra.mxu0 %v1604
    %1728 = vmatprep.subr.bf16.mxu0 0
    %1729 = vmatpush1.bf16.msra.mxu0 %v1605
    %1730 = vmatprep.subr.bf16.mxu0 0
    %1731 = vmatpush1.bf16.msra.mxu0 %v1606
    %1732 = vmatprep.subr.bf16.mxu0 0
    %1733 = vmatpush1.bf16.msra.mxu0 %v1607
    %1734 = vmatprep.subr.bf16.mxu0 0
    %1735 = vmatpush1.bf16.msra.mxu0 %v1608
    %1736 = vmatprep.subr.bf16.mxu0 0
    %1737 = vmatpush1.bf16.msra.mxu0 %v1609
    %1738 = vmatprep.subr.bf16.mxu0 0
    %1739 = vmatpush1.bf16.msra.mxu0 %v1610
    %1740 = vmatprep.subr.bf16.mxu0 0
    %1741 = vmatpush1.bf16.msra.mxu0 %v1611
    %1742 = vmatprep.subr.bf16.mxu0 0
    %1743 = vmatpush1.bf16.msra.mxu0 %v1612
    %1744 = vmatprep.subr.bf16.mxu0 0
    %1745 = vmatpush1.bf16.msra.mxu0 %v1613
    %1746 = vmatprep.subr.bf16.mxu0 0
    %1747 = vmatpush1.bf16.msra.mxu0 %v1614
    %1748 = vmatprep.subr.bf16.mxu0 0
    %1749 = vmatpush1.bf16.msra.mxu0 %v1615
    %1750 = vmatprep.subr.bf16.mxu0 0
    %1751 = vmatpush1.bf16.msra.mxu0 %v1616
    %1752 = vmatprep.subr.bf16.mxu0 0
    %1753 = vmatpush1.bf16.msra.mxu0 %v1617
    %1754 = vmatprep.mubr.bf16.mxu0 %v1279
    %1755 = vmatmul.mubr.bf16.gmra.mrb[0].mxu0 %v1278
    %v1756 = vpop.f32.mrb[0].mxu0
    %v1757 = vadd.f32 %v1717, %v1756
    %v1758 = vpop.f32.mrb[0].mxu0
    %v1759 = vpop.f32.mrb[0].mxu0
    %v1760 = vpop.f32.mrb[0].mxu0
    %1761 = vdwg.mxu0
    %1762 = vmatprep.subr.bf16.mxu0 0
    %1763 = vmatpush1.bf16.msra.mxu0 %v1618
    %1764 = vmatprep.subr.bf16.mxu0 0
    %1765 = vmatpush1.bf16.msra.mxu0 %v1619
    %1766 = vmatprep.subr.bf16.mxu0 0
    %1767 = vmatpush1.bf16.msra.mxu0 %v1620
    %1768 = vmatprep.subr.bf16.mxu0 0
    %1769 = vmatpush1.bf16.msra.mxu0 %v1621
    %1770 = vmatprep.subr.bf16.mxu0 0
    %1771 = vmatpush1.bf16.msra.mxu0 %v1622
    %1772 = vmatprep.subr.bf16.mxu0 0
    %1773 = vmatpush1.bf16.msra.mxu0 %v1623
    %1774 = vmatprep.subr.bf16.mxu0 0
    %1775 = vmatpush1.bf16.msra.mxu0 %v1624
    %1776 = vmatprep.subr.bf16.mxu0 0
    %1777 = vmatpush1.bf16.msra.mxu0 %v1625
    %1778 = vmatprep.subr.bf16.mxu0 0
    %1779 = vmatpush1.bf16.msra.mxu0 %v1626
    %1780 = vmatprep.subr.bf16.mxu0 0
    %1781 = vmatpush1.bf16.msra.mxu0 %v1627
    %1782 = vmatprep.subr.bf16.mxu0 0
    %1783 = vmatpush1.bf16.msra.mxu0 %v1628
    %1784 = vmatprep.subr.bf16.mxu0 0
    %1785 = vmatpush1.bf16.msra.mxu0 %v1629
    %1786 = vmatprep.subr.bf16.mxu0 0
    %1787 = vmatpush1.bf16.msra.mxu0 %v1630
    %1788 = vmatprep.subr.bf16.mxu0 0
    %1789 = vmatpush1.bf16.msra.mxu0 %v1631
    %1790 = vmatprep.subr.bf16.mxu0 0
    %1791 = vmatpush1.bf16.msra.mxu0 %v1632
    %1792 = vmatprep.subr.bf16.mxu0 0
    %1793 = vmatpush1.bf16.msra.mxu0 %v1633
    %1794 = vmatprep.mubr.bf16.mxu0 %v1288
    %1795 = vmatmul.mubr.bf16.gmra.mrb[0].mxu0 %v1287
    %v1796 = vpop.f32.mrb[0].mxu0
    %v1797 = vadd.f32 %v1757, %v1796
    %v1798 = vpop.f32.mrb[0].mxu0
    %v1799 = vpop.f32.mrb[0].mxu0
    %v1800 = vpop.f32.mrb[0].mxu0
    %1801 = vdwg.mxu0
    %v1802 = vmax.f32 %v1797, 0.0
    %1803 = vst [vmem:[%s7] sm:$0xf] %v1802
    // Predicated region
    $region38: #{forward.1} parent=1 // pred_check
      _
    $region39: #{forward.1} parent=1 // pred_check_branch
      %1805 = sbr.rel (0) target = $region41
    $region40: #{forward.1} parent=1 // pred_region
      _
    $region41: #{forward.1} parent=1 // pred_fallthru
      _
    // Predicated region
    $region42: #{forward.1} parent=1 // pred_check
      _
    $region43: #{forward.1} parent=1 // pred_check_branch
      %1807 = sbr.rel (0) target = $region45
    $region44: #{forward.1} parent=1 // pred_region
      _
    $region45: #{forward.1} parent=1 // pred_fallthru
      _
    %1808 = vsyncpa [#allocation5], 1
    %1809 = vsyncpa [#allocation7], 1

</llo_original>
